<compile_context>
chip_gen: v7x
topology: tpu7x:2x2x1
jax: 0.10.0
libtpu: 0.0.40
codegen_flags: <defaults>
</compile_context>

<pallas_src>
import functools

import jax
import jax.numpy as jnp
from jax.experimental import pallas as pl
from jax.experimental.pallas import tpu as pltpu


def _rgb_network_kernel(x_ref, w1_ref, w2_ref, o_ref):
    """One grid step processes a (TM, d_in) row-tile of x with a single fused MLP.

    h   = relu(x @ W1_fused)            (TM, 128)  f32 accumulator
    out = sigmoid(h @ W2_blockdiag)     (TM, 4)    == cat([rgb, conf], -1)
    """
    x = x_ref[...]                                           # bf16 (TM, d_in)

    # Layer 1: one 128-wide MXU pass (rgb hidden | conf hidden), f32 accumulate.
    h = jnp.maximum(
        jnp.dot(x, w1_ref[...], preferred_element_type=jnp.float32), 0.0
    )

    # Layer 2: block-diagonal fused head produces [rgb(3) | conf(1)] directly.
    logits = jnp.dot(
        h.astype(jnp.bfloat16), w2_ref[...], preferred_element_type=jnp.float32
    )
    o_ref[...] = jax.nn.sigmoid(logits).astype(o_ref.dtype)


@functools.partial(jax.jit, static_argnames=("tile_m",))
def rgb_network_forward(x, w1_rgb, w2_rgb, w1_conf, w2_conf, *, tile_m=1024):
    """x: (N, input_ch_views + 64).  Returns (N, 3 + ndim) float32."""
    n, d_in = x.shape
    hidden = w1_rgb.shape[1]
    out_rgb = w2_rgb.shape[1]
    out_conf = w2_conf.shape[1]
    d_out = out_rgb + out_conf
    hidden_fused = 2 * hidden                                # 128: fills a full MXU column group

    # --- wrapper-side fusion of the two networks -----------------------------
    # W1_fused: (d_in, 128) = [w1_rgb | w1_conf]
    w1_fused = jnp.concatenate([w1_rgb, w1_conf], axis=1)
    # W2_fused: (128, 4) block-diagonal -> rows 0:64 feed rgb cols 0:3,
    #                                      rows 64:128 feed conf col 3.
    w2_fused = jnp.zeros((hidden_fused, d_out), dtype=jnp.float32)
    w2_fused = w2_fused.at[:hidden, :out_rgb].set(w2_rgb)
    w2_fused = w2_fused.at[hidden:, out_rgb:].set(w2_conf)

    # bf16 inputs/weights (dominant HBM traffic is reading x), f32 accumulation in-kernel.
    x_bf16 = x.astype(jnp.bfloat16)
    w1_bf16 = w1_fused.astype(jnp.bfloat16)
    w2_bf16 = w2_fused.astype(jnp.bfloat16)

    # --- row padding so any batch size works ----------------------------------
    n_blocks = pl.cdiv(n, tile_m)
    n_pad = n_blocks * tile_m
    if n_pad != n:
        x_bf16 = jnp.pad(x_bf16, ((0, n_pad - n), (0, 0)))

    cost = pl.CostEstimate(
        flops=2 * n_pad * (d_in * hidden_fused + hidden_fused * d_out),
        transcendentals=n_pad * d_out,
        bytes_accessed=(
            n_pad * d_in * 2                       # x (bf16)
            + d_in * hidden_fused * 2              # W1 (bf16)
            + hidden_fused * d_out * 2             # W2 (bf16)
            + n_pad * d_out * 4                    # output (f32)
        ),
    )

    out = pl.pallas_call(
        _rgb_network_kernel,
        out_shape=jax.ShapeDtypeStruct((n_pad, d_out), jnp.float32),
        grid_spec=pltpu.PrefetchScalarGridSpec(
            num_scalar_prefetch=0,
            grid=(n_blocks,),
            in_specs=[
                pl.BlockSpec((tile_m, d_in), lambda i: (i, 0)),          # x row tile
                pl.BlockSpec((d_in, hidden_fused), lambda i: (0, 0)),    # fused W1 (resident)
                pl.BlockSpec((hidden_fused, d_out), lambda i: (0, 0)),   # fused block-diag W2
            ],
            out_specs=pl.BlockSpec((tile_m, d_out), lambda i: (i, 0)),
        ),
        compiler_params=pltpu.CompilerParams(
            dimension_semantics=("parallel",),
        ),
        cost_estimate=cost,
    )(x_bf16, w1_bf16, w2_bf16)

    return out[:n]


def _reference(x, w1_rgb, w2_rgb, w1_conf, w2_conf):
    rgb = jax.nn.sigmoid(jnp.maximum(x @ w1_rgb, 0.0) @ w2_rgb)
    conf = jax.nn.sigmoid(jnp.maximum(x @ w1_conf, 0.0) @ w2_conf)
    return jnp.concatenate([rgb, conf], axis=-1)


if __name__ == "__main__":
    # Small, shape-consistent setup:
    #   input_ch_views = 16  ->  D_in = input_ch_views + 64 = 80
    #   hidden = 64 (n_neurons), rgb out = 3, conf out = ndim = 1 (keyword2 is None)
    input_ch_views = 16
    d_in = input_ch_views + 64
    hidden = 64
    out_rgb = 3
    out_conf = 1          # ndim = 1
    n = 3000              # intentionally NOT a multiple of tile_m -> exercises the padded path

    key = jax.random.PRNGKey(0)
    kx, k1, k2, k3, k4 = jax.random.split(key, 5)

    x = jax.random.normal(kx, (n, d_in), dtype=jnp.float32)

    # Deterministic synthetic weights (tcnn FullyFusedMLP has no biases).
    w_scale = 0.1
    w1_rgb = w_scale * jax.random.normal(k1, (d_in, hidden), dtype=jnp.float32)
    w2_rgb = w_scale * jax.random.normal(k2, (hidden, out_rgb), dtype=jnp.float32)
    w1_conf = w_scale * jax.random.normal(k3, (d_in, hidden), dtype=jnp.float32)
    w2_conf = w_scale * jax.random.normal(k4, (hidden, out_conf), dtype=jnp.float32)

    out = rgb_network_forward(x, w1_rgb, w2_rgb, w1_conf, w2_conf, tile_m=1024)
    out = jax.block_until_ready(out)

    ref = _reference(x, w1_rgb, w2_rgb, w1_conf, w2_conf)
    assert out.shape == (n, out_rgb + out_conf)
    # bf16 inputs vs f32 reference: loosened tolerance (outputs are sigmoids in (0,1)).
    assert jnp.allclose(out, ref, atol=2e-2, rtol=2e-2), float(jnp.max(jnp.abs(out - ref)))

    print("KERNEL_OK")
</pallas_src>

<mosaic_0001>
module attributes {stable_mosaic.version = 11 : i64} {
  func.func @_rgb_network_kernel(%arg0: i32, %arg1: memref<1024x80xbf16, #tpu.memory_space<vmem>>, %arg2: memref<80x128xbf16, #tpu.memory_space<vmem>>, %arg3: memref<128x4xbf16, #tpu.memory_space<vmem>>, %arg4: memref<1024x4xf32, #tpu.memory_space<vmem>>) attributes {dimension_semantics = [#tpu.dimension_semantics<parallel>], iteration_bounds = array<i64: 3>, scalar_prefetch = 0 : i64, scratch_operands = 0 : i64, tpu.core_type = #tpu.core_type<tc>, window_params = [{transform_indices = @transform_0, window_bounds = array<i64: 1024, 80>}, {pipeline_mode = #tpu.pipeline_mode<synchronous>, transform_indices = @transform_1, window_bounds = array<i64: 80, 128>}, {pipeline_mode = #tpu.pipeline_mode<synchronous>, transform_indices = @transform_2, window_bounds = array<i64: 128, 4>}, {transform_indices = @transform_3, window_bounds = array<i64: 1024, 4>}]} {
    %c0 = arith.constant 0 : index
    %c0_0 = arith.constant 0 : index
    %0 = vector.load %arg1[%c0, %c0_0] : memref<1024x80xbf16, #tpu.memory_space<vmem>>, vector<1024x80xbf16>
    %c0_1 = arith.constant 0 : index
    %c0_2 = arith.constant 0 : index
    %1 = vector.load %arg2[%c0_1, %c0_2] : memref<80x128xbf16, #tpu.memory_space<vmem>>, vector<80x128xbf16>
    %cst = arith.constant dense<0.000000e+00> : vector<1024x128xf32>
    %2 = tpu.matmul %0, %1, %cst {dimension_numbers = #tpu.dot_dimension_numbers<[1], [0], [0], [1], [0, 0, 1, 1], [], []>} : vector<1024x80xbf16>, vector<80x128xbf16>, vector<1024x128xf32> -> vector<1024x128xf32>
    %cst_3 = arith.constant 0.000000e+00 : f32
    %3 = vector.broadcast %cst_3 : f32 to vector<1024x128xf32>
    %4 = arith.maximumf %2, %3 : vector<1024x128xf32>
    %5 = arith.truncf %4 : vector<1024x128xf32> to vector<1024x128xbf16>
    %c0_4 = arith.constant 0 : index
    %c0_5 = arith.constant 0 : index
    %6 = vector.load %arg3[%c0_4, %c0_5] : memref<128x4xbf16, #tpu.memory_space<vmem>>, vector<128x4xbf16>
    %cst_6 = arith.constant dense<0.000000e+00> : vector<1024x4xf32>
    %7 = tpu.matmul %5, %6, %cst_6 {dimension_numbers = #tpu.dot_dimension_numbers<[1], [0], [0], [1], [0, 0, 1, 1], [], []>} : vector<1024x128xbf16>, vector<128x4xbf16>, vector<1024x4xf32> -> vector<1024x4xf32>
    %8 = arith.negf %7 : vector<1024x4xf32>
    %9 = math.exp %8 : vector<1024x4xf32>
    %cst_7 = arith.constant 1.000000e+00 : f32
    %10 = vector.broadcast %cst_7 : f32 to vector<1024x4xf32>
    %11 = arith.addf %10, %9 : vector<1024x4xf32>
    %12 = arith.divf %10, %11 : vector<1024x4xf32>
    %c0_8 = arith.constant 0 : index
    %c0_9 = arith.constant 0 : index
    %13 = vector.load %arg4[%c0_8, %c0_9] : memref<1024x4xf32, #tpu.memory_space<vmem>>, vector<1024x4xf32>
    tpu.vector_store %arg4[%c0_8, %c0_9], %12 {strides = array<i32>} : memref<1024x4xf32, #tpu.memory_space<vmem>>, vector<1024x4xf32>,
    return
  }
  func.func @transform_0(%arg0: i32) -> (i32, i32) {
    %c0_i32 = arith.constant 0 : i32
    %c0_i32_0 = arith.constant 0 : i32
    return %arg0, %c0_i32 : i32, i32
  }
  func.func @transform_1(%arg0: i32) -> (i32, i32) {
    %c0_i32 = arith.constant 0 : i32
    %c0_i32_0 = arith.constant 0 : i32
    %c0_i32_1 = arith.constant 0 : i32
    return %c0_i32, %c0_i32_0 : i32, i32
  }
  func.func @transform_2(%arg0: i32) -> (i32, i32) {
    %c0_i32 = arith.constant 0 : i32
    %c0_i32_0 = arith.constant 0 : i32
    %c0_i32_1 = arith.constant 0 : i32
    return %c0_i32, %c0_i32_0 : i32, i32
  }
  func.func @transform_3(%arg0: i32) -> (i32, i32) {
    %c0_i32 = arith.constant 0 : i32
    %c0_i32_0 = arith.constant 0 : i32
    return %arg0, %c0_i32 : i32, i32
  }
}

</mosaic_0001>

<llo_original>
// kernel: rgb_network_forward.1
$region0: #{rgb_network_forward.1}
  #allocation0 [shape = 'u32[]', space=smem, size = 0x4, offset = 0x4, fixed_abs, tag = 'smem constant byte address 0x4 - core index']
  #allocation1 [shape = 'u32[144,128]{1,0:T(1,128)}', space=vmem, size = 0x12000, scoped, tag = 'internal scratch']
  %s0 = inlined_call_operand.vmem [shape: bf16[3072,80], index: 0, kind: input, shape index: {}]
  %s1 = inlined_call_operand.vmem [shape: bf16[80,128], index: 1, kind: input, shape index: {}]
  %s2 = inlined_call_operand.vmem [shape: bf16[128,4], index: 2, kind: input, shape index: {}]
  %s3 = inlined_call_operand.vmem [shape: f32[3072,4], index: 3, kind: output, shape index: {}]
  %s4 = sld [smem:[#allocation0]]
  $region45: #{rgb_network_forward.1} parent=0
    _
  %s6 = ssub.s32 1, %s4
  %s7 = scalar_select 0, %s6, %s4
  loop: start=0, step=1, limit=5
  $region2: #{rgb_network_forward.1} parent=0 // loop_pre_header
    _
  $region3: #{rgb_network_forward.1} parent=0 // loop_header
    %s9 = sphi 0, %s13
    %p10 = scmp.ge.s32.totalorder %s9, 5
    %s19 = sphi 0, %s21
    %s22 = sphi 0, %s19
    %s23 = sphi 0, %s22
    %s39 = sphi 0, %s23
    %s43 = sphi 0, %s43
    %s45 = sphi 0, %s43
    %s46 = sphi 0, %s45
    %s60 = sphi 0, %s46
    %s64 = sphi 0, %s64
    %s66 = sphi 0, %s64
    %s67 = sphi 0, %s66
    %s81 = sphi 0, %s67
    %s87 = sphi 0, %s89
    %s90 = sphi 0, %s87
    %s91 = sphi 0, %s90
    %s107 = sphi 0, %s91
  $region4: #{rgb_network_forward.1} parent=0 // loop_header_branch
    %12 = sbr.rel (%p10) target = $region8
  $region5: #{rgb_network_forward.1} parent=0 // loop_body
    %s14 = ssub.s32 %s9, 1
    %s15 = ssub.s32 %s9, 2
    %s16 = sadd.s32 %s9, 1
    %s17 = ssub.s32 %s9, %s16
    %p18 = scmp.eq.s32.totalorder %s17, 0
    %s20 = sadd.s32 %s19, 1
    %s21 = scalar_select %p18, %s19, %s20
    %p24 = pneg %p18
    %p25 = scmp.eq.s32.totalorder %s9, 2
    %p26 = por %p24, %p25
    %p27 = scmp.ne.s32.totalorder %s19, %s22
    %p28 = scmp.eq.s32.totalorder %s9, 0
    %p29 = por %p27, %p28
    %p30 = scmp.ne.s32.totalorder %s19, %s22
    %p31 = scmp.eq.s32.totalorder %s14, 2
    %p32 = por %p30, %p31
    %p33 = scmp.ne.s32.totalorder %s22, %s23
    %p34 = scmp.eq.s32.totalorder %s14, 0
    %p35 = por %p33, %p34
    %p36 = scmp.ne.s32.totalorder %s22, %s23
    %p37 = scmp.eq.s32.totalorder %s15, 2
    %p38 = por %p36, %p37
    %p40 = scmp.ne.s32.totalorder %s23, %s39
    %p41 = scmp.eq.s32.totalorder %s15, 0
    %p42 = por %p40, %p41
    %s44 = sadd.s32 %s43, 1
    %p47 = scmp.eq.s32.totalorder %s9, 2
    %p48 = scmp.ne.s32.totalorder %s43, %s45
    %p49 = scmp.eq.s32.totalorder %s9, 0
    %p50 = por %p48, %p49
    %p51 = scmp.ne.s32.totalorder %s43, %s45
    %p52 = scmp.eq.s32.totalorder %s14, 2
    %p53 = por %p51, %p52
    %p54 = scmp.ne.s32.totalorder %s45, %s46
    %p55 = scmp.eq.s32.totalorder %s14, 0
    %p56 = por %p54, %p55
    %p57 = scmp.ne.s32.totalorder %s45, %s46
    %p58 = scmp.eq.s32.totalorder %s15, 2
    %p59 = por %p57, %p58
    %p61 = scmp.ne.s32.totalorder %s46, %s60
    %p62 = scmp.eq.s32.totalorder %s15, 0
    %p63 = por %p61, %p62
    %s65 = sadd.s32 %s64, 1
    %p68 = scmp.eq.s32.totalorder %s9, 2
    %p69 = scmp.ne.s32.totalorder %s64, %s66
    %p70 = scmp.eq.s32.totalorder %s9, 0
    %p71 = por %p69, %p70
    %p72 = scmp.ne.s32.totalorder %s64, %s66
    %p73 = scmp.eq.s32.totalorder %s14, 2
    %p74 = por %p72, %p73
    %p75 = scmp.ne.s32.totalorder %s66, %s67
    %p76 = scmp.eq.s32.totalorder %s14, 0
    %p77 = por %p75, %p76
    %p78 = scmp.ne.s32.totalorder %s66, %s67
    %p79 = scmp.eq.s32.totalorder %s15, 2
    %p80 = por %p78, %p79
    %p82 = scmp.ne.s32.totalorder %s67, %s81
    %p83 = scmp.eq.s32.totalorder %s15, 0
    %p84 = por %p82, %p83
    %s85 = ssub.s32 %s9, %s16
    %p86 = scmp.eq.s32.totalorder %s85, 0
    %s88 = sadd.s32 %s87, 1
    %s89 = scalar_select %p86, %s87, %s88
    %p92 = pneg %p86
    %p93 = scmp.eq.s32.totalorder %s9, 2
    %p94 = por %p92, %p93
    %p95 = scmp.ne.s32.totalorder %s87, %s90
    %p96 = scmp.eq.s32.totalorder %s9, 0
    %p97 = por %p95, %p96
    %p98 = scmp.ne.s32.totalorder %s87, %s90
    %p99 = scmp.eq.s32.totalorder %s14, 2
    %p100 = por %p98, %p99
    %p101 = scmp.ne.s32.totalorder %s90, %s91
    %p102 = scmp.eq.s32.totalorder %s14, 0
    %p103 = por %p101, %p102
    %p104 = scmp.ne.s32.totalorder %s90, %s91
    %p105 = scmp.eq.s32.totalorder %s15, 2
    %p106 = por %p104, %p105
    %p108 = scmp.ne.s32.totalorder %s91, %s107
    %p109 = scmp.eq.s32.totalorder %s15, 0
    %p110 = por %p108, %p109
    %p111 = scmp.le.s32.totalorder 1, %s9
    %p112 = scmp.lt.s32.totalorder %s9, 4
    %p113 = pnand %p111, %p112
    %p114 = pneg %p113
    // Predicated region
    $region9: #{rgb_network_forward.1} parent=5 // pred_check
      _
    $region10: #{rgb_network_forward.1} parent=5 // pred_check_branch
      %116 = sbr.rel (%p113) target = $region12
    $region11: #{rgb_network_forward.1} parent=5 // pred_region
      %s117 = ssub.s32 %s9, 1
      // Predicated region
      $region13: #{rgb_network_forward.1} parent=11 // pred_check
        %p118 = pneg %p56
      $region14: #{rgb_network_forward.1} parent=11 // pred_check_branch
        %120 = sbr.rel (%p118) target = $region16
      $region15: #{rgb_network_forward.1} parent=11 // pred_region
        _
      $region16: #{rgb_network_forward.1} parent=11 // pred_fallthru
        _
      // Predicated region
      $region17: #{rgb_network_forward.1} parent=11 // pred_check
        %p121 = pneg %p77
      $region18: #{rgb_network_forward.1} parent=11 // pred_check_branch
        %123 = sbr.rel (%p121) target = $region20
      $region19: #{rgb_network_forward.1} parent=11 // pred_region
        _
      $region20: #{rgb_network_forward.1} parent=11 // pred_fallthru
        _
    $region12: #{rgb_network_forward.1} parent=5 // pred_fallthru
      _
    %p124 = scmp.lt.s32.totalorder %s9, 3
    // Predicated region
    $region21: #{rgb_network_forward.1} parent=5 // pred_check
      %p125 = pneg %p124
    $region22: #{rgb_network_forward.1} parent=5 // pred_check_branch
      %127 = sbr.rel (%p125) target = $region24
    $region23: #{rgb_network_forward.1} parent=5 // pred_region
      // Predicated region
      $region25: #{rgb_network_forward.1} parent=23 // pred_check
        %p128 = pneg %p29
      $region26: #{rgb_network_forward.1} parent=23 // pred_check_branch
        %130 = sbr.rel (%p128) target = $region28
      $region27: #{rgb_network_forward.1} parent=23 // pred_region
        %s131 = smul.u32 128, %s9
        %p132 = scmp.lt.s32.totalorder %s131, 383
        %s133 = scalar_select %p132, %s131, 383
        %s134 = smul.addr %s133, 4
        %s135 = scalar_lea.vmem %s0, %s134
        %s136 = smul.u32 128, %s9
      $region28: #{rgb_network_forward.1} parent=23 // pred_fallthru
        _
    $region24: #{rgb_network_forward.1} parent=5 // pred_fallthru
      _
    %p137 = scmp.le.s32.totalorder 1, %s9
    %p138 = scmp.lt.s32.totalorder %s9, 4
    %p139 = pnand %p137, %p138
    %p140 = pneg %p139
    // Predicated region
    $region29: #{rgb_network_forward.1} parent=5 // pred_check
      _
    $region30: #{rgb_network_forward.1} parent=5 // pred_check_branch
      %142 = sbr.rel (%p139) target = $region32
    $region31: #{rgb_network_forward.1} parent=5 // pred_region
      %s143 = ssub.s32 %s9, 1
      %s144 = smul.u32 128, %s14
      %p145 = scmp.lt.s32.totalorder %s144, 383
      %s146 = scalar_select %p145, %s144, 383
      %s147 = smul.addr %s146, 4
      %s148 = scalar_lea.vmem %s0, %s147
      %p149 = pneg %p35
      %p150 = pneg %p32
      %p151 = pneg %p56
      %p152 = pneg %p53
      %p153 = pneg %p77
      %p154 = pneg %p74
      %p155 = pneg %p103
      %p156 = pneg %p100
      %s157 = smul.u32 128, %s14
      %p158 = scmp.lt.s32.totalorder %s157, 383
      %s159 = scalar_select %p158, %s157, 383
      %s160 = smul.addr %s159, 8
      %s161 = scalar_lea.vmem %s3, %s160
      %s162 = smul.u32 128, %s14
      %p163 = scmp.lt.s32.totalorder %s162, 383
      %s164 = scalar_select %p163, %s162, 383
      %s165 = smul.addr %s164, 4
      %s166 = scalar_lea.vmem %s0, %s165
      %s167 = smul.u32 128, %s14
      %s168 = smul.u32 128, %s14
      %p169 = scmp.lt.s32.totalorder %s168, 383
      %s170 = scalar_select %p169, %s168, 383
      %s171 = smul.addr %s170, 8
      %s172 = scalar_lea.vmem %s3, %s171
      %s173 = smul.u32 128, %s14
      %v175 = vld [vmem:[%s166] sm:$0xf]
      %v176 = vld [vmem:[%s166 + $0x4] sm:$0xf]
      %v177 = vld [vmem:[%s166 + $0x8] sm:$0xf]
      %v178 = vld [vmem:[%s166 + $0xc] sm:$0xf]
      %v179 = vld [vmem:[%s166 + $0x10] sm:$0xf]
      %v180 = vld [vmem:[%s166 + $0x14] sm:$0xf]
      %v181 = vld [vmem:[%s166 + $0x18] sm:$0xf]
      %v182 = vld [vmem:[%s166 + $0x1c] sm:$0xf]
      %v183 = vld [vmem:[%s166 + $0x20] sm:$0xf]
      %v184 = vld [vmem:[%s166 + $0x24] sm:$0xf]
      %v185 = vld [vmem:[%s166 + $0x28] sm:$0xf]
      %v186 = vld [vmem:[%s166 + $0x2c] sm:$0xf]
      %v187 = vld [vmem:[%s166 + $0x30] sm:$0xf]
      %v188 = vld [vmem:[%s166 + $0x34] sm:$0xf]
      %v189 = vld [vmem:[%s166 + $0x38] sm:$0xf]
      %v190 = vld [vmem:[%s166 + $0x3c] sm:$0xf]
      %v191 = vld [vmem:[%s166 + $0x40] sm:$0xf]
      %v192 = vld [vmem:[%s166 + $0x44] sm:$0xf]
      %v193 = vld [vmem:[%s166 + $0x48] sm:$0xf]
      %v194 = vld [vmem:[%s166 + $0x4c] sm:$0xf]
      %v195 = vld [vmem:[%s166 + $0x50] sm:$0xf]
      %v196 = vld [vmem:[%s166 + $0x54] sm:$0xf]
      %v197 = vld [vmem:[%s166 + $0x58] sm:$0xf]
      %v198 = vld [vmem:[%s166 + $0x5c] sm:$0xf]
      %v199 = vld [vmem:[%s166 + $0x60] sm:$0xf]
      %v200 = vld [vmem:[%s166 + $0x64] sm:$0xf]
      %v201 = vld [vmem:[%s166 + $0x68] sm:$0xf]
      %v202 = vld [vmem:[%s166 + $0x6c] sm:$0xf]
      %v203 = vld [vmem:[%s166 + $0x70] sm:$0xf]
      %v204 = vld [vmem:[%s166 + $0x74] sm:$0xf]
      %v205 = vld [vmem:[%s166 + $0x78] sm:$0xf]
      %v206 = vld [vmem:[%s166 + $0x7c] sm:$0xf]
      %v207 = vld [vmem:[%s166 + $0x80] sm:$0xf]
      %v208 = vld [vmem:[%s166 + $0x84] sm:$0xf]
      %v209 = vld [vmem:[%s166 + $0x88] sm:$0xf]
      %v210 = vld [vmem:[%s166 + $0x8c] sm:$0xf]
      %v211 = vld [vmem:[%s166 + $0x90] sm:$0xf]
      %v212 = vld [vmem:[%s166 + $0x94] sm:$0xf]
      %v213 = vld [vmem:[%s166 + $0x98] sm:$0xf]
      %v214 = vld [vmem:[%s166 + $0x9c] sm:$0xf]
      %v215 = vld [vmem:[%s166 + $0xa0] sm:$0xf]
      %v216 = vld [vmem:[%s166 + $0xa4] sm:$0xf]
      %v217 = vld [vmem:[%s166 + $0xa8] sm:$0xf]
      %v218 = vld [vmem:[%s166 + $0xac] sm:$0xf]
      %v219 = vld [vmem:[%s166 + $0xb0] sm:$0xf]
      %v220 = vld [vmem:[%s166 + $0xb4] sm:$0xf]
      %v221 = vld [vmem:[%s166 + $0xb8] sm:$0xf]
      %v222 = vld [vmem:[%s166 + $0xbc] sm:$0xf]
      %v223 = vld [vmem:[%s166 + $0xc0] sm:$0xf]
      %v224 = vld [vmem:[%s166 + $0xc4] sm:$0xf]
      %v225 = vld [vmem:[%s166 + $0xc8] sm:$0xf]
      %v226 = vld [vmem:[%s166 + $0xcc] sm:$0xf]
      %v227 = vld [vmem:[%s166 + $0xd0] sm:$0xf]
      %v228 = vld [vmem:[%s166 + $0xd4] sm:$0xf]
      %v229 = vld [vmem:[%s166 + $0xd8] sm:$0xf]
      %v230 = vld [vmem:[%s166 + $0xdc] sm:$0xf]
      %v231 = vld [vmem:[%s166 + $0xe0] sm:$0xf]
      %v232 = vld [vmem:[%s166 + $0xe4] sm:$0xf]
      %v233 = vld [vmem:[%s166 + $0xe8] sm:$0xf]
      %v234 = vld [vmem:[%s166 + $0xec] sm:$0xf]
      %v235 = vld [vmem:[%s166 + $0xf0] sm:$0xf]
      %v236 = vld [vmem:[%s166 + $0xf4] sm:$0xf]
      %v237 = vld [vmem:[%s166 + $0xf8] sm:$0xf]
      %v238 = vld [vmem:[%s166 + $0xfc] sm:$0xf]
      %v239 = vld [vmem:[%s166 + $0x100] sm:$0xf]
      %v240 = vld [vmem:[%s166 + $0x104] sm:$0xf]
      %v241 = vld [vmem:[%s166 + $0x108] sm:$0xf]
      %v242 = vld [vmem:[%s166 + $0x10c] sm:$0xf]
      %v243 = vld [vmem:[%s166 + $0x110] sm:$0xf]
      %v244 = vld [vmem:[%s166 + $0x114] sm:$0xf]
      %v245 = vld [vmem:[%s166 + $0x118] sm:$0xf]
      %v246 = vld [vmem:[%s166 + $0x11c] sm:$0xf]
      %v247 = vld [vmem:[%s166 + $0x120] sm:$0xf]
      %v248 = vld [vmem:[%s166 + $0x124] sm:$0xf]
      %v249 = vld [vmem:[%s166 + $0x128] sm:$0xf]
      %v250 = vld [vmem:[%s166 + $0x12c] sm:$0xf]
      %v251 = vld [vmem:[%s166 + $0x130] sm:$0xf]
      %v252 = vld [vmem:[%s166 + $0x134] sm:$0xf]
      %v253 = vld [vmem:[%s166 + $0x138] sm:$0xf]
      %v254 = vld [vmem:[%s166 + $0x13c] sm:$0xf]
      %v255 = vld [vmem:[%s166 + $0x140] sm:$0xf]
      %v256 = vld [vmem:[%s166 + $0x144] sm:$0xf]
      %v257 = vld [vmem:[%s166 + $0x148] sm:$0xf]
      %v258 = vld [vmem:[%s166 + $0x14c] sm:$0xf]
      %v259 = vld [vmem:[%s166 + $0x150] sm:$0xf]
      %v260 = vld [vmem:[%s166 + $0x154] sm:$0xf]
      %v261 = vld [vmem:[%s166 + $0x158] sm:$0xf]
      %v262 = vld [vmem:[%s166 + $0x15c] sm:$0xf]
      %v263 = vld [vmem:[%s166 + $0x160] sm:$0xf]
      %v264 = vld [vmem:[%s166 + $0x164] sm:$0xf]
      %v265 = vld [vmem:[%s166 + $0x168] sm:$0xf]
      %v266 = vld [vmem:[%s166 + $0x16c] sm:$0xf]
      %v267 = vld [vmem:[%s166 + $0x170] sm:$0xf]
      %v268 = vld [vmem:[%s166 + $0x174] sm:$0xf]
      %v269 = vld [vmem:[%s166 + $0x178] sm:$0xf]
      %v270 = vld [vmem:[%s166 + $0x17c] sm:$0xf]
      %v271 = vld [vmem:[%s166 + $0x180] sm:$0xf]
      %v272 = vld [vmem:[%s166 + $0x184] sm:$0xf]
      %v273 = vld [vmem:[%s166 + $0x188] sm:$0xf]
      %v274 = vld [vmem:[%s166 + $0x18c] sm:$0xf]
      %v275 = vld [vmem:[%s166 + $0x190] sm:$0xf]
      %v276 = vld [vmem:[%s166 + $0x194] sm:$0xf]
      %v277 = vld [vmem:[%s166 + $0x198] sm:$0xf]
      %v278 = vld [vmem:[%s166 + $0x19c] sm:$0xf]
      %v279 = vld [vmem:[%s166 + $0x1a0] sm:$0xf]
      %v280 = vld [vmem:[%s166 + $0x1a4] sm:$0xf]
      %v281 = vld [vmem:[%s166 + $0x1a8] sm:$0xf]
      %v282 = vld [vmem:[%s166 + $0x1ac] sm:$0xf]
      %v283 = vld [vmem:[%s166 + $0x1b0] sm:$0xf]
      %v284 = vld [vmem:[%s166 + $0x1b4] sm:$0xf]
      %v285 = vld [vmem:[%s166 + $0x1b8] sm:$0xf]
      %v286 = vld [vmem:[%s166 + $0x1bc] sm:$0xf]
      %v287 = vld [vmem:[%s166 + $0x1c0] sm:$0xf]
      %v288 = vld [vmem:[%s166 + $0x1c4] sm:$0xf]
      %v289 = vld [vmem:[%s166 + $0x1c8] sm:$0xf]
      %v290 = vld [vmem:[%s166 + $0x1cc] sm:$0xf]
      %v291 = vld [vmem:[%s166 + $0x1d0] sm:$0xf]
      %v292 = vld [vmem:[%s166 + $0x1d4] sm:$0xf]
      %v293 = vld [vmem:[%s166 + $0x1d8] sm:$0xf]
      %v294 = vld [vmem:[%s166 + $0x1dc] sm:$0xf]
      %v295 = vld [vmem:[%s166 + $0x1e0] sm:$0xf]
      %v296 = vld [vmem:[%s166 + $0x1e4] sm:$0xf]
      %v297 = vld [vmem:[%s166 + $0x1e8] sm:$0xf]
      %v298 = vld [vmem:[%s166 + $0x1ec] sm:$0xf]
      %v299 = vld [vmem:[%s166 + $0x1f0] sm:$0xf]
      %v300 = vld [vmem:[%s166 + $0x1f4] sm:$0xf]
      %v301 = vld [vmem:[%s166 + $0x1f8] sm:$0xf]
      %v302 = vld [vmem:[%s166 + $0x1fc] sm:$0xf]
      %v303 = vld [vmem:[%s1] sm:$0xf]
      %v304 = vld [vmem:[%s1 + $0x4] sm:$0xf]
      %v305 = vld [vmem:[%s1 + $0x8] sm:$0xf]
      %v306 = vld [vmem:[%s1 + $0xc] sm:$0xf]
      %v307 = vld [vmem:[%s1 + $0x10] sm:$0xf]
      %v308 = vld [vmem:[%s1 + $0x14] sm:$0xf]
      %v309 = vld [vmem:[%s1 + $0x18] sm:$0xf]
      %v310 = vld [vmem:[%s1 + $0x1c] sm:$0xf]
      %v311 = vld [vmem:[%s1 + $0x20] sm:$0xf]
      %v312 = vld [vmem:[%s1 + $0x24] sm:$0xf]
      %v441 = vunpack.c.l.b16 %v175
      %v442 = vunpack.c.l.b16 %v176
      %v443 = vunpack.c.l.b16 %v177
      %v444 = vunpack.c.l.b16 %v178
      %v445 = vunpack.c.l.b16 %v179
      %v446 = vunpack.c.l.b16 %v180
      %v447 = vunpack.c.l.b16 %v181
      %v448 = vunpack.c.l.b16 %v182
      %v449 = vunpack.c.l.b16 %v183
      %v450 = vunpack.c.l.b16 %v184
      %v451 = vunpack.c.l.b16 %v185
      %v452 = vunpack.c.l.b16 %v186
      %v453 = vunpack.c.l.b16 %v187
      %v454 = vunpack.c.l.b16 %v188
      %v455 = vunpack.c.l.b16 %v189
      %v456 = vunpack.c.l.b16 %v190
      %v457 = vunpack.c.l.b16 %v191
      %v458 = vunpack.c.l.b16 %v192
      %v459 = vunpack.c.l.b16 %v193
      %v460 = vunpack.c.l.b16 %v194
      %v461 = vunpack.c.l.b16 %v195
      %v462 = vunpack.c.l.b16 %v196
      %v463 = vunpack.c.l.b16 %v197
      %v464 = vunpack.c.l.b16 %v198
      %v465 = vunpack.c.l.b16 %v199
      %v466 = vunpack.c.l.b16 %v200
      %v467 = vunpack.c.l.b16 %v201
      %v468 = vunpack.c.l.b16 %v202
      %v469 = vunpack.c.l.b16 %v203
      %v470 = vunpack.c.l.b16 %v204
      %v471 = vunpack.c.l.b16 %v205
      %v472 = vunpack.c.l.b16 %v206
      %v473 = vunpack.c.l.b16 %v207
      %v474 = vunpack.c.l.b16 %v208
      %v475 = vunpack.c.l.b16 %v209
      %v476 = vunpack.c.l.b16 %v210
      %v477 = vunpack.c.l.b16 %v211
      %v478 = vunpack.c.l.b16 %v212
      %v479 = vunpack.c.l.b16 %v213
      %v480 = vunpack.c.l.b16 %v214
      %v481 = vunpack.c.l.b16 %v215
      %v482 = vunpack.c.l.b16 %v216
      %v483 = vunpack.c.l.b16 %v217
      %v484 = vunpack.c.l.b16 %v218
      %v485 = vunpack.c.l.b16 %v219
      %v486 = vunpack.c.l.b16 %v220
      %v487 = vunpack.c.l.b16 %v221
      %v488 = vunpack.c.l.b16 %v222
      %v489 = vunpack.c.l.b16 %v223
      %v490 = vunpack.c.l.b16 %v224
      %v491 = vunpack.c.l.b16 %v225
      %v492 = vunpack.c.l.b16 %v226
      %v493 = vunpack.c.l.b16 %v227
      %v494 = vunpack.c.l.b16 %v228
      %v495 = vunpack.c.l.b16 %v229
      %v496 = vunpack.c.l.b16 %v230
      %v497 = vunpack.c.l.b16 %v231
      %v498 = vunpack.c.l.b16 %v232
      %v499 = vunpack.c.l.b16 %v233
      %v500 = vunpack.c.l.b16 %v234
      %v501 = vunpack.c.l.b16 %v235
      %v502 = vunpack.c.l.b16 %v236
      %v503 = vunpack.c.l.b16 %v237
      %v504 = vunpack.c.l.b16 %v238
      %v505 = vunpack.c.l.b16 %v239
      %v506 = vunpack.c.l.b16 %v240
      %v507 = vunpack.c.l.b16 %v241
      %v508 = vunpack.c.l.b16 %v242
      %v509 = vunpack.c.l.b16 %v243
      %v510 = vunpack.c.l.b16 %v244
      %v511 = vunpack.c.l.b16 %v245
      %v512 = vunpack.c.l.b16 %v246
      %v513 = vunpack.c.l.b16 %v247
      %v514 = vunpack.c.l.b16 %v248
      %v515 = vunpack.c.l.b16 %v249
      %v516 = vunpack.c.l.b16 %v250
      %v517 = vunpack.c.l.b16 %v251
      %v518 = vunpack.c.l.b16 %v252
      %v519 = vunpack.c.l.b16 %v253
      %v520 = vunpack.c.l.b16 %v254
      %v521 = vunpack.c.l.b16 %v255
      %v522 = vunpack.c.l.b16 %v256
      %v523 = vunpack.c.l.b16 %v257
      %v524 = vunpack.c.l.b16 %v258
      %v525 = vunpack.c.l.b16 %v259
      %v526 = vunpack.c.l.b16 %v260
      %v527 = vunpack.c.l.b16 %v261
      %v528 = vunpack.c.l.b16 %v262
      %v529 = vunpack.c.l.b16 %v263
      %v530 = vunpack.c.l.b16 %v264
      %v531 = vunpack.c.l.b16 %v265
      %v532 = vunpack.c.l.b16 %v266
      %v533 = vunpack.c.l.b16 %v267
      %v534 = vunpack.c.l.b16 %v268
      %v535 = vunpack.c.l.b16 %v269
      %v536 = vunpack.c.l.b16 %v270
      %v537 = vunpack.c.l.b16 %v271
      %v538 = vunpack.c.l.b16 %v272
      %v539 = vunpack.c.l.b16 %v273
      %v540 = vunpack.c.l.b16 %v274
      %v541 = vunpack.c.l.b16 %v275
      %v542 = vunpack.c.l.b16 %v276
      %v543 = vunpack.c.l.b16 %v277
      %v544 = vunpack.c.l.b16 %v278
      %v545 = vunpack.c.l.b16 %v279
      %v546 = vunpack.c.l.b16 %v280
      %v547 = vunpack.c.l.b16 %v281
      %v548 = vunpack.c.l.b16 %v282
      %v549 = vunpack.c.l.b16 %v283
      %v550 = vunpack.c.l.b16 %v284
      %v551 = vunpack.c.l.b16 %v285
      %v552 = vunpack.c.l.b16 %v286
      %v553 = vunpack.c.l.b16 %v287
      %v554 = vunpack.c.l.b16 %v288
      %v555 = vunpack.c.l.b16 %v289
      %v556 = vunpack.c.l.b16 %v290
      %v557 = vunpack.c.l.b16 %v291
      %v558 = vunpack.c.l.b16 %v292
      %v559 = vunpack.c.l.b16 %v293
      %v560 = vunpack.c.l.b16 %v294
      %v561 = vunpack.c.l.b16 %v295
      %v562 = vunpack.c.l.b16 %v296
      %v563 = vunpack.c.l.b16 %v297
      %v564 = vunpack.c.l.b16 %v298
      %v565 = vunpack.c.l.b16 %v299
      %v566 = vunpack.c.l.b16 %v300
      %v567 = vunpack.c.l.b16 %v301
      %v568 = vunpack.c.l.b16 %v302
      %v569 = vpack.c.b16 %v442, %v441
      %v570 = vpack.c.b16 %v444, %v443
      %v571 = vpack.c.b16 %v446, %v445
      %v572 = vpack.c.b16 %v448, %v447
      %v573 = vpack.c.b16 %v450, %v449
      %v574 = vpack.c.b16 %v452, %v451
      %v575 = vpack.c.b16 %v454, %v453
      %v576 = vpack.c.b16 %v456, %v455
      %v577 = vpack.c.b16 %v458, %v457
      %v578 = vpack.c.b16 %v460, %v459
      %v579 = vpack.c.b16 %v462, %v461
      %v580 = vpack.c.b16 %v464, %v463
      %v581 = vpack.c.b16 %v466, %v465
      %v582 = vpack.c.b16 %v468, %v467
      %v583 = vpack.c.b16 %v470, %v469
      %v584 = vpack.c.b16 %v472, %v471
      %v585 = vpack.c.b16 %v474, %v473
      %v586 = vpack.c.b16 %v476, %v475
      %v587 = vpack.c.b16 %v478, %v477
      %v588 = vpack.c.b16 %v480, %v479
      %v589 = vpack.c.b16 %v482, %v481
      %v590 = vpack.c.b16 %v484, %v483
      %v591 = vpack.c.b16 %v486, %v485
      %v592 = vpack.c.b16 %v488, %v487
      %v593 = vpack.c.b16 %v490, %v489
      %v594 = vpack.c.b16 %v492, %v491
      %v595 = vpack.c.b16 %v494, %v493
      %v596 = vpack.c.b16 %v496, %v495
      %v597 = vpack.c.b16 %v498, %v497
      %v598 = vpack.c.b16 %v500, %v499
      %v599 = vpack.c.b16 %v502, %v501
      %v600 = vpack.c.b16 %v504, %v503
      %v601 = vpack.c.b16 %v506, %v505
      %v602 = vpack.c.b16 %v508, %v507
      %v603 = vpack.c.b16 %v510, %v509
      %v604 = vpack.c.b16 %v512, %v511
      %v605 = vpack.c.b16 %v514, %v513
      %v606 = vpack.c.b16 %v516, %v515
      %v607 = vpack.c.b16 %v518, %v517
      %v608 = vpack.c.b16 %v520, %v519
      %v609 = vpack.c.b16 %v522, %v521
      %v610 = vpack.c.b16 %v524, %v523
      %v611 = vpack.c.b16 %v526, %v525
      %v612 = vpack.c.b16 %v528, %v527
      %v613 = vpack.c.b16 %v530, %v529
      %v614 = vpack.c.b16 %v532, %v531
      %v615 = vpack.c.b16 %v534, %v533
      %v616 = vpack.c.b16 %v536, %v535
      %v617 = vpack.c.b16 %v538, %v537
      %v618 = vpack.c.b16 %v540, %v539
      %v619 = vpack.c.b16 %v542, %v541
      %v620 = vpack.c.b16 %v544, %v543
      %v621 = vpack.c.b16 %v546, %v545
      %v622 = vpack.c.b16 %v548, %v547
      %v623 = vpack.c.b16 %v550, %v549
      %v624 = vpack.c.b16 %v552, %v551
      %v625 = vpack.c.b16 %v554, %v553
      %v626 = vpack.c.b16 %v556, %v555
      %v627 = vpack.c.b16 %v558, %v557
      %v628 = vpack.c.b16 %v560, %v559
      %v629 = vpack.c.b16 %v562, %v561
      %v630 = vpack.c.b16 %v564, %v563
      %v631 = vpack.c.b16 %v566, %v565
      %v632 = vpack.c.b16 %v568, %v567
      %v643 = vunpack.c.l.b16 %v303
      %v644 = vunpack.c.l.b16 %v304
      %v645 = vunpack.c.l.b16 %v305
      %v646 = vunpack.c.l.b16 %v306
      %v647 = vunpack.c.l.b16 %v307
      %v648 = vunpack.c.l.b16 %v308
      %v649 = vunpack.c.l.b16 %v309
      %v650 = vunpack.c.l.b16 %v310
      %v651 = vunpack.c.l.b16 %v311
      %v652 = vunpack.c.l.b16 %v312
      %v653 = vpack.c.b16 %v644, %v643
      %v654 = vpack.c.b16 %v646, %v645
      %v655 = vpack.c.b16 %v648, %v647
      %v656 = vpack.c.b16 %v650, %v649
      %v657 = vpack.c.b16 %v652, %v651
      %vm663 = vcmask 654336
      %v665 = vsel %vm663, %v569, 0
      %v668 = vsel %vm663, %v570, 0
      %v671 = vsel %vm663, %v571, 0
      %v674 = vsel %vm663, %v572, 0
      %v677 = vsel %vm663, %v573, 0
      %v680 = vsel %vm663, %v574, 0
      %v683 = vsel %vm663, %v575, 0
      %v686 = vsel %vm663, %v576, 0
      %v689 = vsel %vm663, %v577, 0
      %v692 = vsel %vm663, %v578, 0
      %v695 = vsel %vm663, %v579, 0
      %v698 = vsel %vm663, %v580, 0
      %v701 = vsel %vm663, %v581, 0
      %v704 = vsel %vm663, %v582, 0
      %v707 = vsel %vm663, %v583, 0
      %v710 = vsel %vm663, %v584, 0
      %v713 = vsel %vm663, %v585, 0
      %v716 = vsel %vm663, %v586, 0
      %v719 = vsel %vm663, %v587, 0
      %v722 = vsel %vm663, %v588, 0
      %v725 = vsel %vm663, %v589, 0
      %v728 = vsel %vm663, %v590, 0
      %v731 = vsel %vm663, %v591, 0
      %v734 = vsel %vm663, %v592, 0
      %v737 = vsel %vm663, %v593, 0
      %v740 = vsel %vm663, %v594, 0
      %v743 = vsel %vm663, %v595, 0
      %v746 = vsel %vm663, %v596, 0
      %v749 = vsel %vm663, %v597, 0
      %v752 = vsel %vm663, %v598, 0
      %v755 = vsel %vm663, %v599, 0
      %v758 = vsel %vm663, %v600, 0
      %v761 = vsel %vm663, %v601, 0
      %v764 = vsel %vm663, %v602, 0
      %v767 = vsel %vm663, %v603, 0
      %v770 = vsel %vm663, %v604, 0
      %v773 = vsel %vm663, %v605, 0
      %v776 = vsel %vm663, %v606, 0
      %v779 = vsel %vm663, %v607, 0
      %v782 = vsel %vm663, %v608, 0
      %v785 = vsel %vm663, %v609, 0
      %v788 = vsel %vm663, %v610, 0
      %v791 = vsel %vm663, %v611, 0
      %v794 = vsel %vm663, %v612, 0
      %v797 = vsel %vm663, %v613, 0
      %v800 = vsel %vm663, %v614, 0
      %v803 = vsel %vm663, %v615, 0
      %v806 = vsel %vm663, %v616, 0
      %v809 = vsel %vm663, %v617, 0
      %v812 = vsel %vm663, %v618, 0
      %v815 = vsel %vm663, %v619, 0
      %v818 = vsel %vm663, %v620, 0
      %v821 = vsel %vm663, %v621, 0
      %v824 = vsel %vm663, %v622, 0
      %v827 = vsel %vm663, %v623, 0
      %v830 = vsel %vm663, %v624, 0
      %v833 = vsel %vm663, %v625, 0
      %v836 = vsel %vm663, %v626, 0
      %v839 = vsel %vm663, %v627, 0
      %v842 = vsel %vm663, %v628, 0
      %v845 = vsel %vm663, %v629, 0
      %v848 = vsel %vm663, %v630, 0
      %v851 = vsel %vm663, %v631, 0
      %v854 = vsel %vm663, %v632, 0
      %856 = vmatprep.subr.bf16.mxu0 0
      %857 = vmatpush1.bf16.msra.mxu0 %v653
      %858 = vmatprep.subr.bf16.mxu0 0
      %859 = vmatpush1.bf16.msra.mxu0 %v654
      %860 = vmatprep.subr.bf16.mxu0 0
      %861 = vmatpush1.bf16.msra.mxu0 %v655
      %862 = vmatprep.subr.bf16.mxu0 0
      %863 = vmatpush1.bf16.msra.mxu0 %v656
      %864 = vmatprep.subr.bf16.mxu0 0
      %865 = vmatpush1.bf16.msra.mxu0 %v657
      %866 = vmatprep.subr.bf16.mxu0 0
      %867 = vmatpush1.bf16.msra.mxu0 0
      %868 = vmatprep.subr.bf16.mxu0 0
      %869 = vmatpush1.bf16.msra.mxu0 0
      %870 = vmatprep.subr.bf16.mxu0 0
      %871 = vmatpush1.bf16.msra.mxu0 0
      %872 = vmatprep.subr.bf16.mxu0 0
      %873 = vmatpush1.bf16.msra.mxu0 0
      %874 = vmatprep.subr.bf16.mxu0 0
      %875 = vmatpush1.bf16.msra.mxu0 0
      %876 = vmatprep.subr.bf16.mxu0 0
      %877 = vmatpush1.bf16.msra.mxu0 0
      %878 = vmatprep.subr.bf16.mxu0 0
      %879 = vmatpush1.bf16.msra.mxu0 0
      %880 = vmatprep.subr.bf16.mxu0 0
      %881 = vmatpush1.bf16.msra.mxu0 0
      %882 = vmatprep.subr.bf16.mxu0 0
      %883 = vmatpush1.bf16.msra.mxu0 0
      %884 = vmatprep.subr.bf16.mxu0 0
      %885 = vmatpush1.bf16.msra.mxu0 0
      %886 = vmatprep.subr.bf16.mxu0 0
      %887 = vmatpush1.bf16.msra.mxu0 0
      %888 = vmatprep.mubr.bf16.mxu0 0
      %889 = vmatmul.mubr.bf16.gmra.mrb[0].mxu0 %v665
      %v890 = vpop.f32.mrb[0].mxu0
      %v891 = vadd.f32 0.0, %v890
      %v892 = vpop.f32.mrb[0].mxu0
      %v893 = vpop.f32.mrb[0].mxu0
      %v894 = vadd.f32 0.0, %v893
      %v895 = vpop.f32.mrb[0].mxu0
      %896 = vmatprep.mubr.bf16.mxu0 0
      %897 = vmatmul.mubr.bf16.gmra.mrb[0].mxu0 %v668
      %v898 = vpop.f32.mrb[0].mxu0
      %v899 = vadd.f32 0.0, %v898
      %v900 = vpop.f32.mrb[0].mxu0
      %v901 = vpop.f32.mrb[0].mxu0
      %v902 = vadd.f32 0.0, %v901
      %v903 = vpop.f32.mrb[0].mxu0
      %904 = vmatprep.mubr.bf16.mxu0 0
      %905 = vmatmul.mubr.bf16.gmra.mrb[0].mxu0 %v671
      %v906 = vpop.f32.mrb[0].mxu0
      %v907 = vadd.f32 0.0, %v906
      %v908 = vpop.f32.mrb[0].mxu0
      %v909 = vpop.f32.mrb[0].mxu0
      %v910 = vadd.f32 0.0, %v909
      %v911 = vpop.f32.mrb[0].mxu0
      %912 = vmatprep.mubr.bf16.mxu0 0
      %913 = vmatmul.mubr.bf16.gmra.mrb[0].mxu0 %v674
      %v914 = vpop.f32.mrb[0].mxu0
      %v915 = vadd.f32 0.0, %v914
      %v916 = vpop.f32.mrb[0].mxu0
      %v917 = vpop.f32.mrb[0].mxu0
      %v918 = vadd.f32 0.0, %v917
      %v919 = vpop.f32.mrb[0].mxu0
      %920 = vmatprep.mubr.bf16.mxu0 0
      %921 = vmatmul.mubr.bf16.gmra.mrb[0].mxu0 %v677
      %v922 = vpop.f32.mrb[0].mxu0
      %v923 = vadd.f32 0.0, %v922
      %v924 = vpop.f32.mrb[0].mxu0
      %v925 = vpop.f32.mrb[0].mxu0
      %v926 = vadd.f32 0.0, %v925
      %v927 = vpop.f32.mrb[0].mxu0
      %928 = vmatprep.mubr.bf16.mxu0 0
      %929 = vmatmul.mubr.bf16.gmra.mrb[0].mxu0 %v680
      %v930 = vpop.f32.mrb[0].mxu0
      %v931 = vadd.f32 0.0, %v930
      %v932 = vpop.f32.mrb[0].mxu0
      %v933 = vpop.f32.mrb[0].mxu0
      %v934 = vadd.f32 0.0, %v933
      %v935 = vpop.f32.mrb[0].mxu0
      %936 = vmatprep.mubr.bf16.mxu0 0
      %937 = vmatmul.mubr.bf16.gmra.mrb[0].mxu0 %v683
      %v938 = vpop.f32.mrb[0].mxu0
      %v939 = vadd.f32 0.0, %v938
      %v940 = vpop.f32.mrb[0].mxu0
      %v941 = vpop.f32.mrb[0].mxu0
      %v942 = vadd.f32 0.0, %v941
      %v943 = vpop.f32.mrb[0].mxu0
      %944 = vmatprep.mubr.bf16.mxu0 0
      %945 = vmatmul.mubr.bf16.gmra.mrb[0].mxu0 %v686
      %v946 = vpop.f32.mrb[0].mxu0
      %v947 = vadd.f32 0.0, %v946
      %v948 = vpop.f32.mrb[0].mxu0
      %v949 = vpop.f32.mrb[0].mxu0
      %v950 = vadd.f32 0.0, %v949
      %v951 = vpop.f32.mrb[0].mxu0
      %952 = vmatprep.mubr.bf16.mxu0 0
      %953 = vmatmul.mubr.bf16.gmra.mrb[0].mxu0 %v689
      %v954 = vpop.f32.mrb[0].mxu0
      %v955 = vadd.f32 0.0, %v954
      %v956 = vpop.f32.mrb[0].mxu0
      %v957 = vpop.f32.mrb[0].mxu0
      %v958 = vadd.f32 0.0, %v957
      %v959 = vpop.f32.mrb[0].mxu0
      %960 = vmatprep.mubr.bf16.mxu0 0
      %961 = vmatmul.mubr.bf16.gmra.mrb[0].mxu0 %v692
      %v962 = vpop.f32.mrb[0].mxu0
      %v963 = vadd.f32 0.0, %v962
      %v964 = vpop.f32.mrb[0].mxu0
      %v965 = vpop.f32.mrb[0].mxu0
      %v966 = vadd.f32 0.0, %v965
      %v967 = vpop.f32.mrb[0].mxu0
      %968 = vmatprep.mubr.bf16.mxu0 0
      %969 = vmatmul.mubr.bf16.gmra.mrb[0].mxu0 %v695
      %v970 = vpop.f32.mrb[0].mxu0
      %v971 = vadd.f32 0.0, %v970
      %v972 = vpop.f32.mrb[0].mxu0
      %v973 = vpop.f32.mrb[0].mxu0
      %v974 = vadd.f32 0.0, %v973
      %v975 = vpop.f32.mrb[0].mxu0
      %976 = vmatprep.mubr.bf16.mxu0 0
      %977 = vmatmul.mubr.bf16.gmra.mrb[0].mxu0 %v698
      %v978 = vpop.f32.mrb[0].mxu0
      %v979 = vadd.f32 0.0, %v978
      %v980 = vpop.f32.mrb[0].mxu0
      %v981 = vpop.f32.mrb[0].mxu0
      %v982 = vadd.f32 0.0, %v981
      %v983 = vpop.f32.mrb[0].mxu0
      %984 = vmatprep.mubr.bf16.mxu0 0
      %985 = vmatmul.mubr.bf16.gmra.mrb[0].mxu0 %v701
      %v986 = vpop.f32.mrb[0].mxu0
      %v987 = vadd.f32 0.0, %v986
      %v988 = vpop.f32.mrb[0].mxu0
      %v989 = vpop.f32.mrb[0].mxu0
      %v990 = vadd.f32 0.0, %v989
      %v991 = vpop.f32.mrb[0].mxu0
      %992 = vmatprep.mubr.bf16.mxu0 0
      %993 = vmatmul.mubr.bf16.gmra.mrb[0].mxu0 %v704
      %v994 = vpop.f32.mrb[0].mxu0
      %v995 = vadd.f32 0.0, %v994
      %v996 = vpop.f32.mrb[0].mxu0
      %v997 = vpop.f32.mrb[0].mxu0
      %v998 = vadd.f32 0.0, %v997
      %v999 = vpop.f32.mrb[0].mxu0
      %1000 = vmatprep.mubr.bf16.mxu0 0
      %1001 = vmatmul.mubr.bf16.gmra.mrb[0].mxu0 %v707
      %v1002 = vpop.f32.mrb[0].mxu0
      %v1003 = vadd.f32 0.0, %v1002
      %v1004 = vpop.f32.mrb[0].mxu0
      %v1005 = vpop.f32.mrb[0].mxu0
      %v1006 = vadd.f32 0.0, %v1005
      %v1007 = vpop.f32.mrb[0].mxu0
      %1008 = vmatprep.mubr.bf16.mxu0 0
      %1009 = vmatmul.mubr.bf16.gmra.mrb[0].mxu0 %v710
      %v1010 = vpop.f32.mrb[0].mxu0
      %v1011 = vadd.f32 0.0, %v1010
      %v1012 = vpop.f32.mrb[0].mxu0
      %v1013 = vpop.f32.mrb[0].mxu0
      %v1014 = vadd.f32 0.0, %v1013
      %v1015 = vpop.f32.mrb[0].mxu0
      %1016 = vmatprep.mubr.bf16.mxu0 0
      %1017 = vmatmul.mubr.bf16.gmra.mrb[0].mxu0 %v713
      %v1018 = vpop.f32.mrb[0].mxu0
      %v1019 = vadd.f32 0.0, %v1018
      %v1020 = vpop.f32.mrb[0].mxu0
      %v1021 = vpop.f32.mrb[0].mxu0
      %v1022 = vadd.f32 0.0, %v1021
      %v1023 = vpop.f32.mrb[0].mxu0
      %1024 = vmatprep.mubr.bf16.mxu0 0
      %1025 = vmatmul.mubr.bf16.gmra.mrb[0].mxu0 %v716
      %v1026 = vpop.f32.mrb[0].mxu0
      %v1027 = vadd.f32 0.0, %v1026
      %v1028 = vpop.f32.mrb[0].mxu0
      %v1029 = vpop.f32.mrb[0].mxu0
      %v1030 = vadd.f32 0.0, %v1029
      %v1031 = vpop.f32.mrb[0].mxu0
      %1032 = vmatprep.mubr.bf16.mxu0 0
      %1033 = vmatmul.mubr.bf16.gmra.mrb[0].mxu0 %v719
      %v1034 = vpop.f32.mrb[0].mxu0
      %v1035 = vadd.f32 0.0, %v1034
      %v1036 = vpop.f32.mrb[0].mxu0
      %v1037 = vpop.f32.mrb[0].mxu0
      %v1038 = vadd.f32 0.0, %v1037
      %v1039 = vpop.f32.mrb[0].mxu0
      %1040 = vmatprep.mubr.bf16.mxu0 0
      %1041 = vmatmul.mubr.bf16.gmra.mrb[0].mxu0 %v722
      %v1042 = vpop.f32.mrb[0].mxu0
      %v1043 = vadd.f32 0.0, %v1042
      %v1044 = vpop.f32.mrb[0].mxu0
      %v1045 = vpop.f32.mrb[0].mxu0
      %v1046 = vadd.f32 0.0, %v1045
      %v1047 = vpop.f32.mrb[0].mxu0
      %1048 = vmatprep.mubr.bf16.mxu0 0
      %1049 = vmatmul.mubr.bf16.gmra.mrb[0].mxu0 %v725
      %v1050 = vpop.f32.mrb[0].mxu0
      %v1051 = vadd.f32 0.0, %v1050
      %v1052 = vpop.f32.mrb[0].mxu0
      %v1053 = vpop.f32.mrb[0].mxu0
      %v1054 = vadd.f32 0.0, %v1053
      %v1055 = vpop.f32.mrb[0].mxu0
      %1056 = vmatprep.mubr.bf16.mxu0 0
      %1057 = vmatmul.mubr.bf16.gmra.mrb[0].mxu0 %v728
      %v1058 = vpop.f32.mrb[0].mxu0
      %v1059 = vadd.f32 0.0, %v1058
      %v1060 = vpop.f32.mrb[0].mxu0
      %v1061 = vpop.f32.mrb[0].mxu0
      %v1062 = vadd.f32 0.0, %v1061
      %v1063 = vpop.f32.mrb[0].mxu0
      %1064 = vmatprep.mubr.bf16.mxu0 0
      %1065 = vmatmul.mubr.bf16.gmra.mrb[0].mxu0 %v731
      %v1066 = vpop.f32.mrb[0].mxu0
      %v1067 = vadd.f32 0.0, %v1066
      %v1068 = vpop.f32.mrb[0].mxu0
      %v1069 = vpop.f32.mrb[0].mxu0
      %v1070 = vadd.f32 0.0, %v1069
      %v1071 = vpop.f32.mrb[0].mxu0
      %1072 = vmatprep.mubr.bf16.mxu0 0
      %1073 = vmatmul.mubr.bf16.gmra.mrb[0].mxu0 %v734
      %v1074 = vpop.f32.mrb[0].mxu0
      %v1075 = vadd.f32 0.0, %v1074
      %v1076 = vpop.f32.mrb[0].mxu0
      %v1077 = vpop.f32.mrb[0].mxu0
      %v1078 = vadd.f32 0.0, %v1077
      %v1079 = vpop.f32.mrb[0].mxu0
      %1080 = vmatprep.mubr.bf16.mxu0 0
      %1081 = vmatmul.mubr.bf16.gmra.mrb[0].mxu0 %v737
      %v1082 = vpop.f32.mrb[0].mxu0
      %v1083 = vadd.f32 0.0, %v1082
      %v1084 = vpop.f32.mrb[0].mxu0
      %v1085 = vpop.f32.mrb[0].mxu0
      %v1086 = vadd.f32 0.0, %v1085
      %v1087 = vpop.f32.mrb[0].mxu0
      %1088 = vmatprep.mubr.bf16.mxu0 0
      %1089 = vmatmul.mubr.bf16.gmra.mrb[0].mxu0 %v740
      %v1090 = vpop.f32.mrb[0].mxu0
      %v1091 = vadd.f32 0.0, %v1090
      %v1092 = vpop.f32.mrb[0].mxu0
      %v1093 = vpop.f32.mrb[0].mxu0
      %v1094 = vadd.f32 0.0, %v1093
      %v1095 = vpop.f32.mrb[0].mxu0
      %1096 = vmatprep.mubr.bf16.mxu0 0
      %1097 = vmatmul.mubr.bf16.gmra.mrb[0].mxu0 %v743
      %v1098 = vpop.f32.mrb[0].mxu0
      %v1099 = vadd.f32 0.0, %v1098
      %v1100 = vpop.f32.mrb[0].mxu0
      %v1101 = vpop.f32.mrb[0].mxu0
      %v1102 = vadd.f32 0.0, %v1101
      %v1103 = vpop.f32.mrb[0].mxu0
      %1104 = vmatprep.mubr.bf16.mxu0 0
      %1105 = vmatmul.mubr.bf16.gmra.mrb[0].mxu0 %v746
      %v1106 = vpop.f32.mrb[0].mxu0
      %v1107 = vadd.f32 0.0, %v1106
      %v1108 = vpop.f32.mrb[0].mxu0
      %v1109 = vpop.f32.mrb[0].mxu0
      %v1110 = vadd.f32 0.0, %v1109
      %v1111 = vpop.f32.mrb[0].mxu0
      %1112 = vmatprep.mubr.bf16.mxu0 0
      %1113 = vmatmul.mubr.bf16.gmra.mrb[0].mxu0 %v749
      %v1114 = vpop.f32.mrb[0].mxu0
      %v1115 = vadd.f32 0.0, %v1114
      %v1116 = vpop.f32.mrb[0].mxu0
      %v1117 = vpop.f32.mrb[0].mxu0
      %v1118 = vadd.f32 0.0, %v1117
      %v1119 = vpop.f32.mrb[0].mxu0
      %1120 = vmatprep.mubr.bf16.mxu0 0
      %1121 = vmatmul.mubr.bf16.gmra.mrb[0].mxu0 %v752
      %v1122 = vpop.f32.mrb[0].mxu0
      %v1123 = vadd.f32 0.0, %v1122
      %v1124 = vpop.f32.mrb[0].mxu0
      %v1125 = vpop.f32.mrb[0].mxu0
      %v1126 = vadd.f32 0.0, %v1125
      %v1127 = vpop.f32.mrb[0].mxu0
      %1128 = vmatprep.mubr.bf16.mxu0 0
      %1129 = vmatmul.mubr.bf16.gmra.mrb[0].mxu0 %v755
      %v1130 = vpop.f32.mrb[0].mxu0
      %v1131 = vadd.f32 0.0, %v1130
      %v1132 = vpop.f32.mrb[0].mxu0
      %v1133 = vpop.f32.mrb[0].mxu0
      %v1134 = vadd.f32 0.0, %v1133
      %v1135 = vpop.f32.mrb[0].mxu0
      %1136 = vmatprep.mubr.bf16.mxu0 0
      %1137 = vmatmul.mubr.bf16.gmra.mrb[0].mxu0 %v758
      %v1138 = vpop.f32.mrb[0].mxu0
      %v1139 = vadd.f32 0.0, %v1138
      %v1140 = vpop.f32.mrb[0].mxu0
      %v1141 = vpop.f32.mrb[0].mxu0
      %v1142 = vadd.f32 0.0, %v1141
      %v1143 = vpop.f32.mrb[0].mxu0
      %1144 = vmatprep.mubr.bf16.mxu0 0
      %1145 = vmatmul.mubr.bf16.gmra.mrb[0].mxu0 %v761
      %v1146 = vpop.f32.mrb[0].mxu0
      %v1147 = vadd.f32 0.0, %v1146
      %v1148 = vpop.f32.mrb[0].mxu0
      %v1149 = vpop.f32.mrb[0].mxu0
      %v1150 = vadd.f32 0.0, %v1149
      %v1151 = vpop.f32.mrb[0].mxu0
      %1152 = vmatprep.mubr.bf16.mxu0 0
      %1153 = vmatmul.mubr.bf16.gmra.mrb[0].mxu0 %v764
      %v1154 = vpop.f32.mrb[0].mxu0
      %v1155 = vadd.f32 0.0, %v1154
      %v1156 = vpop.f32.mrb[0].mxu0
      %v1157 = vpop.f32.mrb[0].mxu0
      %v1158 = vadd.f32 0.0, %v1157
      %v1159 = vpop.f32.mrb[0].mxu0
      %1160 = vmatprep.mubr.bf16.mxu0 0
      %1161 = vmatmul.mubr.bf16.gmra.mrb[0].mxu0 %v767
      %v1162 = vpop.f32.mrb[0].mxu0
      %v1163 = vadd.f32 0.0, %v1162
      %v1164 = vpop.f32.mrb[0].mxu0
      %v1165 = vpop.f32.mrb[0].mxu0
      %v1166 = vadd.f32 0.0, %v1165
      %v1167 = vpop.f32.mrb[0].mxu0
      %1168 = vmatprep.mubr.bf16.mxu0 0
      %1169 = vmatmul.mubr.bf16.gmra.mrb[0].mxu0 %v770
      %v1170 = vpop.f32.mrb[0].mxu0
      %v1171 = vadd.f32 0.0, %v1170
      %v1172 = vpop.f32.mrb[0].mxu0
      %v1173 = vpop.f32.mrb[0].mxu0
      %v1174 = vadd.f32 0.0, %v1173
      %v1175 = vpop.f32.mrb[0].mxu0
      %1176 = vmatprep.mubr.bf16.mxu0 0
      %1177 = vmatmul.mubr.bf16.gmra.mrb[0].mxu0 %v773
      %v1178 = vpop.f32.mrb[0].mxu0
      %v1179 = vadd.f32 0.0, %v1178
      %v1180 = vpop.f32.mrb[0].mxu0
      %v1181 = vpop.f32.mrb[0].mxu0
      %v1182 = vadd.f32 0.0, %v1181
      %v1183 = vpop.f32.mrb[0].mxu0
      %1184 = vmatprep.mubr.bf16.mxu0 0
      %1185 = vmatmul.mubr.bf16.gmra.mrb[0].mxu0 %v776
      %v1186 = vpop.f32.mrb[0].mxu0
      %v1187 = vadd.f32 0.0, %v1186
      %v1188 = vpop.f32.mrb[0].mxu0
      %v1189 = vpop.f32.mrb[0].mxu0
      %v1190 = vadd.f32 0.0, %v1189
      %v1191 = vpop.f32.mrb[0].mxu0
      %1192 = vmatprep.mubr.bf16.mxu0 0
      %1193 = vmatmul.mubr.bf16.gmra.mrb[0].mxu0 %v779
      %v1194 = vpop.f32.mrb[0].mxu0
      %v1195 = vadd.f32 0.0, %v1194
      %v1196 = vpop.f32.mrb[0].mxu0
      %v1197 = vpop.f32.mrb[0].mxu0
      %v1198 = vadd.f32 0.0, %v1197
      %v1199 = vpop.f32.mrb[0].mxu0
      %1200 = vmatprep.mubr.bf16.mxu0 0
      %1201 = vmatmul.mubr.bf16.gmra.mrb[0].mxu0 %v782
      %v1202 = vpop.f32.mrb[0].mxu0
      %v1203 = vadd.f32 0.0, %v1202
      %v1204 = vpop.f32.mrb[0].mxu0
      %v1205 = vpop.f32.mrb[0].mxu0
      %v1206 = vadd.f32 0.0, %v1205
      %v1207 = vpop.f32.mrb[0].mxu0
      %1208 = vmatprep.mubr.bf16.mxu0 0
      %1209 = vmatmul.mubr.bf16.gmra.mrb[0].mxu0 %v785
      %v1210 = vpop.f32.mrb[0].mxu0
      %v1211 = vadd.f32 0.0, %v1210
      %v1212 = vpop.f32.mrb[0].mxu0
      %v1213 = vpop.f32.mrb[0].mxu0
      %v1214 = vadd.f32 0.0, %v1213
      %v1215 = vpop.f32.mrb[0].mxu0
      %1216 = vmatprep.mubr.bf16.mxu0 0
      %1217 = vmatmul.mubr.bf16.gmra.mrb[0].mxu0 %v788
      %v1218 = vpop.f32.mrb[0].mxu0
      %v1219 = vadd.f32 0.0, %v1218
      %v1220 = vpop.f32.mrb[0].mxu0
      %v1221 = vpop.f32.mrb[0].mxu0
      %v1222 = vadd.f32 0.0, %v1221
      %v1223 = vpop.f32.mrb[0].mxu0
      %1224 = vmatprep.mubr.bf16.mxu0 0
      %1225 = vmatmul.mubr.bf16.gmra.mrb[0].mxu0 %v791
      %v1226 = vpop.f32.mrb[0].mxu0
      %v1227 = vadd.f32 0.0, %v1226
      %v1228 = vpop.f32.mrb[0].mxu0
      %v1229 = vpop.f32.mrb[0].mxu0
      %v1230 = vadd.f32 0.0, %v1229
      %v1231 = vpop.f32.mrb[0].mxu0
      %1232 = vmatprep.mubr.bf16.mxu0 0
      %1233 = vmatmul.mubr.bf16.gmra.mrb[0].mxu0 %v794
      %v1234 = vpop.f32.mrb[0].mxu0
      %v1235 = vadd.f32 0.0, %v1234
      %v1236 = vpop.f32.mrb[0].mxu0
      %v1237 = vpop.f32.mrb[0].mxu0
      %v1238 = vadd.f32 0.0, %v1237
      %v1239 = vpop.f32.mrb[0].mxu0
      %1240 = vmatprep.mubr.bf16.mxu0 0
      %1241 = vmatmul.mubr.bf16.gmra.mrb[0].mxu0 %v797
      %v1242 = vpop.f32.mrb[0].mxu0
      %v1243 = vadd.f32 0.0, %v1242
      %v1244 = vpop.f32.mrb[0].mxu0
      %v1245 = vpop.f32.mrb[0].mxu0
      %v1246 = vadd.f32 0.0, %v1245
      %v1247 = vpop.f32.mrb[0].mxu0
      %1248 = vmatprep.mubr.bf16.mxu0 0
      %1249 = vmatmul.mubr.bf16.gmra.mrb[0].mxu0 %v800
      %v1250 = vpop.f32.mrb[0].mxu0
      %v1251 = vadd.f32 0.0, %v1250
      %v1252 = vpop.f32.mrb[0].mxu0
      %v1253 = vpop.f32.mrb[0].mxu0
      %v1254 = vadd.f32 0.0, %v1253
      %v1255 = vpop.f32.mrb[0].mxu0
      %1256 = vmatprep.mubr.bf16.mxu0 0
      %1257 = vmatmul.mubr.bf16.gmra.mrb[0].mxu0 %v803
      %v1258 = vpop.f32.mrb[0].mxu0
      %v1259 = vadd.f32 0.0, %v1258
      %v1260 = vpop.f32.mrb[0].mxu0
      %v1261 = vpop.f32.mrb[0].mxu0
      %v1262 = vadd.f32 0.0, %v1261
      %v1263 = vpop.f32.mrb[0].mxu0
      %1264 = vmatprep.mubr.bf16.mxu0 0
      %1265 = vmatmul.mubr.bf16.gmra.mrb[0].mxu0 %v806
      %v1266 = vpop.f32.mrb[0].mxu0
      %v1267 = vadd.f32 0.0, %v1266
      %v1268 = vpop.f32.mrb[0].mxu0
      %v1269 = vpop.f32.mrb[0].mxu0
      %v1270 = vadd.f32 0.0, %v1269
      %v1271 = vpop.f32.mrb[0].mxu0
      %1272 = vmatprep.mubr.bf16.mxu0 0
      %1273 = vmatmul.mubr.bf16.gmra.mrb[0].mxu0 %v809
      %v1274 = vpop.f32.mrb[0].mxu0
      %v1275 = vadd.f32 0.0, %v1274
      %v1276 = vpop.f32.mrb[0].mxu0
      %v1277 = vpop.f32.mrb[0].mxu0
      %v1278 = vadd.f32 0.0, %v1277
      %v1279 = vpop.f32.mrb[0].mxu0
      %1280 = vmatprep.mubr.bf16.mxu0 0
      %1281 = vmatmul.mubr.bf16.gmra.mrb[0].mxu0 %v812
      %v1282 = vpop.f32.mrb[0].mxu0
      %v1283 = vadd.f32 0.0, %v1282
      %v1284 = vpop.f32.mrb[0].mxu0
      %v1285 = vpop.f32.mrb[0].mxu0
      %v1286 = vadd.f32 0.0, %v1285
      %v1287 = vpop.f32.mrb[0].mxu0
      %1288 = vmatprep.mubr.bf16.mxu0 0
      %1289 = vmatmul.mubr.bf16.gmra.mrb[0].mxu0 %v815
      %v1290 = vpop.f32.mrb[0].mxu0
      %v1291 = vadd.f32 0.0, %v1290
      %v1292 = vpop.f32.mrb[0].mxu0
      %v1293 = vpop.f32.mrb[0].mxu0
      %v1294 = vadd.f32 0.0, %v1293
      %v1295 = vpop.f32.mrb[0].mxu0
      %1296 = vmatprep.mubr.bf16.mxu0 0
      %1297 = vmatmul.mubr.bf16.gmra.mrb[0].mxu0 %v818
      %v1298 = vpop.f32.mrb[0].mxu0
      %v1299 = vadd.f32 0.0, %v1298
      %v1300 = vpop.f32.mrb[0].mxu0
      %v1301 = vpop.f32.mrb[0].mxu0
      %v1302 = vadd.f32 0.0, %v1301
      %v1303 = vpop.f32.mrb[0].mxu0
      %1304 = vmatprep.mubr.bf16.mxu0 0
      %1305 = vmatmul.mubr.bf16.gmra.mrb[0].mxu0 %v821
      %v1306 = vpop.f32.mrb[0].mxu0
      %v1307 = vadd.f32 0.0, %v1306
      %v1308 = vpop.f32.mrb[0].mxu0
      %v1309 = vpop.f32.mrb[0].mxu0
      %v1310 = vadd.f32 0.0, %v1309
      %v1311 = vpop.f32.mrb[0].mxu0
      %1312 = vmatprep.mubr.bf16.mxu0 0
      %1313 = vmatmul.mubr.bf16.gmra.mrb[0].mxu0 %v824
      %v1314 = vpop.f32.mrb[0].mxu0
      %v1315 = vadd.f32 0.0, %v1314
      %v1316 = vpop.f32.mrb[0].mxu0
      %v1317 = vpop.f32.mrb[0].mxu0
      %v1318 = vadd.f32 0.0, %v1317
      %v1319 = vpop.f32.mrb[0].mxu0
      %1320 = vmatprep.mubr.bf16.mxu0 0
      %1321 = vmatmul.mubr.bf16.gmra.mrb[0].mxu0 %v827
      %v1322 = vpop.f32.mrb[0].mxu0
      %v1323 = vadd.f32 0.0, %v1322
      %v1324 = vpop.f32.mrb[0].mxu0
      %v1325 = vpop.f32.mrb[0].mxu0
      %v1326 = vadd.f32 0.0, %v1325
      %v1327 = vpop.f32.mrb[0].mxu0
      %1328 = vmatprep.mubr.bf16.mxu0 0
      %1329 = vmatmul.mubr.bf16.gmra.mrb[0].mxu0 %v830
      %v1330 = vpop.f32.mrb[0].mxu0
      %v1331 = vadd.f32 0.0, %v1330
      %v1332 = vpop.f32.mrb[0].mxu0
      %v1333 = vpop.f32.mrb[0].mxu0
      %v1334 = vadd.f32 0.0, %v1333
      %v1335 = vpop.f32.mrb[0].mxu0
      %1336 = vmatprep.mubr.bf16.mxu0 0
      %1337 = vmatmul.mubr.bf16.gmra.mrb[0].mxu0 %v833
      %v1338 = vpop.f32.mrb[0].mxu0
      %v1339 = vadd.f32 0.0, %v1338
      %v1340 = vpop.f32.mrb[0].mxu0
      %v1341 = vpop.f32.mrb[0].mxu0
      %v1342 = vadd.f32 0.0, %v1341
      %v1343 = vpop.f32.mrb[0].mxu0
      %1344 = vmatprep.mubr.bf16.mxu0 0
      %1345 = vmatmul.mubr.bf16.gmra.mrb[0].mxu0 %v836
      %v1346 = vpop.f32.mrb[0].mxu0
      %v1347 = vadd.f32 0.0, %v1346
      %v1348 = vpop.f32.mrb[0].mxu0
      %v1349 = vpop.f32.mrb[0].mxu0
      %v1350 = vadd.f32 0.0, %v1349
      %v1351 = vpop.f32.mrb[0].mxu0
      %1352 = vmatprep.mubr.bf16.mxu0 0
      %1353 = vmatmul.mubr.bf16.gmra.mrb[0].mxu0 %v839
      %v1354 = vpop.f32.mrb[0].mxu0
      %v1355 = vadd.f32 0.0, %v1354
      %v1356 = vpop.f32.mrb[0].mxu0
      %v1357 = vpop.f32.mrb[0].mxu0
      %v1358 = vadd.f32 0.0, %v1357
      %v1359 = vpop.f32.mrb[0].mxu0
      %1360 = vmatprep.mubr.bf16.mxu0 0
      %1361 = vmatmul.mubr.bf16.gmra.mrb[0].mxu0 %v842
      %v1362 = vpop.f32.mrb[0].mxu0
      %v1363 = vadd.f32 0.0, %v1362
      %v1364 = vpop.f32.mrb[0].mxu0
      %v1365 = vpop.f32.mrb[0].mxu0
      %v1366 = vadd.f32 0.0, %v1365
      %v1367 = vpop.f32.mrb[0].mxu0
      %1368 = vmatprep.mubr.bf16.mxu0 0
      %1369 = vmatmul.mubr.bf16.gmra.mrb[0].mxu0 %v845
      %v1370 = vpop.f32.mrb[0].mxu0
      %v1371 = vadd.f32 0.0, %v1370
      %v1372 = vpop.f32.mrb[0].mxu0
      %v1373 = vpop.f32.mrb[0].mxu0
      %v1374 = vadd.f32 0.0, %v1373
      %v1375 = vpop.f32.mrb[0].mxu0
      %1376 = vmatprep.mubr.bf16.mxu0 0
      %1377 = vmatmul.mubr.bf16.gmra.mrb[0].mxu0 %v848
      %v1378 = vpop.f32.mrb[0].mxu0
      %v1379 = vadd.f32 0.0, %v1378
      %v1380 = vpop.f32.mrb[0].mxu0
      %v1381 = vpop.f32.mrb[0].mxu0
      %v1382 = vadd.f32 0.0, %v1381
      %v1383 = vpop.f32.mrb[0].mxu0
      %1384 = vmatprep.mubr.bf16.mxu0 0
      %1385 = vmatmul.mubr.bf16.gmra.mrb[0].mxu0 %v851
      %v1386 = vpop.f32.mrb[0].mxu0
      %v1387 = vadd.f32 0.0, %v1386
      %v1388 = vpop.f32.mrb[0].mxu0
      %v1389 = vpop.f32.mrb[0].mxu0
      %v1390 = vadd.f32 0.0, %v1389
      %v1391 = vpop.f32.mrb[0].mxu0
      %1392 = vmatprep.mubr.bf16.mxu0 0
      %1393 = vmatmul.mubr.bf16.gmra.mrb[0].mxu0 %v854
      %v1394 = vpop.f32.mrb[0].mxu0
      %v1395 = vadd.f32 0.0, %v1394
      %v1396 = vpop.f32.mrb[0].mxu0
      %v1397 = vpop.f32.mrb[0].mxu0
      %v1398 = vadd.f32 0.0, %v1397
      %v1399 = vpop.f32.mrb[0].mxu0
      %1400 = vdwg.mxu0
      %v1401 = vmax.f32 %v891, 0.0
      %v1402 = vmax.f32 %v894, 0.0
      %v1403 = vmax.f32 %v899, 0.0
      %v1404 = vmax.f32 %v902, 0.0
      %v1405 = vmax.f32 %v907, 0.0
      %v1406 = vmax.f32 %v910, 0.0
      %v1407 = vmax.f32 %v915, 0.0
      %v1408 = vmax.f32 %v918, 0.0
      %v1409 = vmax.f32 %v923, 0.0
      %v1410 = vmax.f32 %v926, 0.0
      %v1411 = vmax.f32 %v931, 0.0
      %v1412 = vmax.f32 %v934, 0.0
      %v1413 = vmax.f32 %v939, 0.0
      %v1414 = vmax.f32 %v942, 0.0
      %v1415 = vmax.f32 %v947, 0.0
      %v1416 = vmax.f32 %v950, 0.0
      %v1417 = vmax.f32 %v955, 0.0
      %v1418 = vmax.f32 %v958, 0.0
      %v1419 = vmax.f32 %v963, 0.0
      %v1420 = vmax.f32 %v966, 0.0
      %v1421 = vmax.f32 %v971, 0.0
      %v1422 = vmax.f32 %v974, 0.0
      %v1423 = vmax.f32 %v979, 0.0
      %v1424 = vmax.f32 %v982, 0.0
      %v1425 = vmax.f32 %v987, 0.0
      %v1426 = vmax.f32 %v990, 0.0
      %v1427 = vmax.f32 %v995, 0.0
      %v1428 = vmax.f32 %v998, 0.0
      %v1429 = vmax.f32 %v1003, 0.0
      %v1430 = vmax.f32 %v1006, 0.0
      %v1431 = vmax.f32 %v1011, 0.0
      %v1432 = vmax.f32 %v1014, 0.0
      %v1433 = vmax.f32 %v1019, 0.0
      %v1434 = vmax.f32 %v1022, 0.0
      %v1435 = vmax.f32 %v1027, 0.0
      %v1436 = vmax.f32 %v1030, 0.0
      %v1437 = vmax.f32 %v1035, 0.0
      %v1438 = vmax.f32 %v1038, 0.0
      %v1439 = vmax.f32 %v1043, 0.0
      %v1440 = vmax.f32 %v1046, 0.0
      %v1441 = vmax.f32 %v1051, 0.0
      %v1442 = vmax.f32 %v1054, 0.0
      %v1443 = vmax.f32 %v1059, 0.0
      %v1444 = vmax.f32 %v1062, 0.0
      %v1445 = vmax.f32 %v1067, 0.0
      %v1446 = vmax.f32 %v1070, 0.0
      %v1447 = vmax.f32 %v1075, 0.0
      %v1448 = vmax.f32 %v1078, 0.0
      %v1449 = vmax.f32 %v1083, 0.0
      %v1450 = vmax.f32 %v1086, 0.0
      %v1451 = vmax.f32 %v1091, 0.0
      %v1452 = vmax.f32 %v1094, 0.0
      %v1453 = vmax.f32 %v1099, 0.0
      %v1454 = vmax.f32 %v1102, 0.0
      %v1455 = vmax.f32 %v1107, 0.0
      %v1456 = vmax.f32 %v1110, 0.0
      %v1457 = vmax.f32 %v1115, 0.0
      %v1458 = vmax.f32 %v1118, 0.0
      %v1459 = vmax.f32 %v1123, 0.0
      %v1460 = vmax.f32 %v1126, 0.0
      %v1461 = vmax.f32 %v1131, 0.0
      %v1462 = vmax.f32 %v1134, 0.0
      %v1463 = vmax.f32 %v1139, 0.0
      %v1464 = vmax.f32 %v1142, 0.0
      %v1465 = vmax.f32 %v1147, 0.0
      %v1466 = vmax.f32 %v1150, 0.0
      %v1467 = vmax.f32 %v1155, 0.0
      %v1468 = vmax.f32 %v1158, 0.0
      %v1469 = vmax.f32 %v1163, 0.0
      %v1470 = vmax.f32 %v1166, 0.0
      %v1471 = vmax.f32 %v1171, 0.0
      %v1472 = vmax.f32 %v1174, 0.0
      %v1473 = vmax.f32 %v1179, 0.0
      %v1474 = vmax.f32 %v1182, 0.0
      %v1475 = vmax.f32 %v1187, 0.0
      %v1476 = vmax.f32 %v1190, 0.0
      %v1477 = vmax.f32 %v1195, 0.0
      %v1478 = vmax.f32 %v1198, 0.0
      %v1479 = vmax.f32 %v1203, 0.0
      %v1480 = vmax.f32 %v1206, 0.0
      %v1481 = vmax.f32 %v1211, 0.0
      %v1482 = vmax.f32 %v1214, 0.0
      %v1483 = vmax.f32 %v1219, 0.0
      %v1484 = vmax.f32 %v1222, 0.0
      %v1485 = vmax.f32 %v1227, 0.0
      %v1486 = vmax.f32 %v1230, 0.0
      %v1487 = vmax.f32 %v1235, 0.0
      %v1488 = vmax.f32 %v1238, 0.0
      %v1489 = vmax.f32 %v1243, 0.0
      %v1490 = vmax.f32 %v1246, 0.0
      %v1491 = vmax.f32 %v1251, 0.0
      %v1492 = vmax.f32 %v1254, 0.0
      %v1493 = vmax.f32 %v1259, 0.0
      %v1494 = vmax.f32 %v1262, 0.0
      %v1495 = vmax.f32 %v1267, 0.0
      %v1496 = vmax.f32 %v1270, 0.0
      %v1497 = vmax.f32 %v1275, 0.0
      %v1498 = vmax.f32 %v1278, 0.0
      %v1499 = vmax.f32 %v1283, 0.0
      %v1500 = vmax.f32 %v1286, 0.0
      %v1501 = vmax.f32 %v1291, 0.0
      %v1502 = vmax.f32 %v1294, 0.0
      %v1503 = vmax.f32 %v1299, 0.0
      %v1504 = vmax.f32 %v1302, 0.0
      %v1505 = vmax.f32 %v1307, 0.0
      %v1506 = vmax.f32 %v1310, 0.0
      %v1507 = vmax.f32 %v1315, 0.0
      %v1508 = vmax.f32 %v1318, 0.0
      %v1509 = vmax.f32 %v1323, 0.0
      %v1510 = vmax.f32 %v1326, 0.0
      %v1511 = vmax.f32 %v1331, 0.0
      %v1512 = vmax.f32 %v1334, 0.0
      %v1513 = vmax.f32 %v1339, 0.0
      %v1514 = vmax.f32 %v1342, 0.0
      %v1515 = vmax.f32 %v1347, 0.0
      %v1516 = vmax.f32 %v1350, 0.0
      %v1517 = vmax.f32 %v1355, 0.0
      %v1518 = vmax.f32 %v1358, 0.0
      %v1519 = vmax.f32 %v1363, 0.0
      %v1520 = vmax.f32 %v1366, 0.0
      %v1521 = vmax.f32 %v1371, 0.0
      %v1522 = vmax.f32 %v1374, 0.0
      %v1523 = vmax.f32 %v1379, 0.0
      %v1524 = vmax.f32 %v1382, 0.0
      %v1525 = vmax.f32 %v1387, 0.0
      %v1526 = vmax.f32 %v1390, 0.0
      %v1527 = vmax.f32 %v1395, 0.0
      %v1528 = vmax.f32 %v1398, 0.0
      %v1529 = vpack.c.bf16 %v1402, %v1401
      %v1530 = vpack.c.bf16 %v1404, %v1403
      %v1531 = vpack.c.bf16 %v1406, %v1405
      %v1532 = vpack.c.bf16 %v1408, %v1407
      %v1533 = vpack.c.bf16 %v1410, %v1409
      %v1534 = vpack.c.bf16 %v1412, %v1411
      %v1535 = vpack.c.bf16 %v1414, %v1413
      %v1536 = vpack.c.bf16 %v1416, %v1415
      %v1537 = vpack.c.bf16 %v1418, %v1417
      %v1538 = vpack.c.bf16 %v1420, %v1419
      %v1539 = vpack.c.bf16 %v1422, %v1421
      %v1540 = vpack.c.bf16 %v1424, %v1423
      %v1541 = vpack.c.bf16 %v1426, %v1425
      %v1542 = vpack.c.bf16 %v1428, %v1427
      %v1543 = vpack.c.bf16 %v1430, %v1429
      %v1544 = vpack.c.bf16 %v1432, %v1431
      %v1545 = vpack.c.bf16 %v1434, %v1433
      %v1546 = vpack.c.bf16 %v1436, %v1435
      %v1547 = vpack.c.bf16 %v1438, %v1437
      %v1548 = vpack.c.bf16 %v1440, %v1439
      %v1549 = vpack.c.bf16 %v1442, %v1441
      %v1550 = vpack.c.bf16 %v1444, %v1443
      %v1551 = vpack.c.bf16 %v1446, %v1445
      %v1552 = vpack.c.bf16 %v1448, %v1447
      %v1553 = vpack.c.bf16 %v1450, %v1449
      %v1554 = vpack.c.bf16 %v1452, %v1451
      %v1555 = vpack.c.bf16 %v1454, %v1453
      %v1556 = vpack.c.bf16 %v1456, %v1455
      %v1557 = vpack.c.bf16 %v1458, %v1457
      %v1558 = vpack.c.bf16 %v1460, %v1459
      %v1559 = vpack.c.bf16 %v1462, %v1461
      %v1560 = vpack.c.bf16 %v1464, %v1463
      %v1561 = vpack.c.bf16 %v1466, %v1465
      %v1562 = vpack.c.bf16 %v1468, %v1467
      %v1563 = vpack.c.bf16 %v1470, %v1469
      %v1564 = vpack.c.bf16 %v1472, %v1471
      %v1565 = vpack.c.bf16 %v1474, %v1473
      %v1566 = vpack.c.bf16 %v1476, %v1475
      %v1567 = vpack.c.bf16 %v1478, %v1477
      %v1568 = vpack.c.bf16 %v1480, %v1479
      %v1569 = vpack.c.bf16 %v1482, %v1481
      %v1570 = vpack.c.bf16 %v1484, %v1483
      %v1571 = vpack.c.bf16 %v1486, %v1485
      %v1572 = vpack.c.bf16 %v1488, %v1487
      %v1573 = vpack.c.bf16 %v1490, %v1489
      %v1574 = vpack.c.bf16 %v1492, %v1491
      %v1575 = vpack.c.bf16 %v1494, %v1493
      %v1576 = vpack.c.bf16 %v1496, %v1495
      %v1577 = vpack.c.bf16 %v1498, %v1497
      %v1578 = vpack.c.bf16 %v1500, %v1499
      %v1579 = vpack.c.bf16 %v1502, %v1501
      %v1580 = vpack.c.bf16 %v1504, %v1503
      %v1581 = vpack.c.bf16 %v1506, %v1505
      %v1582 = vpack.c.bf16 %v1508, %v1507
      %v1583 = vpack.c.bf16 %v1510, %v1509
      %v1584 = vpack.c.bf16 %v1512, %v1511
      %v1585 = vpack.c.bf16 %v1514, %v1513
      %v1586 = vpack.c.bf16 %v1516, %v1515
      %v1587 = vpack.c.bf16 %v1518, %v1517
      %v1588 = vpack.c.bf16 %v1520, %v1519
      %v1589 = vpack.c.bf16 %v1522, %v1521
      %v1590 = vpack.c.bf16 %v1524, %v1523
      %v1591 = vpack.c.bf16 %v1526, %v1525
      %v1592 = vpack.c.bf16 %v1528, %v1527
      %v1593 = vld [vmem:[%s2] sm:$0xf]
      %v1594 = vld [vmem:[%s2 + $0x4] sm:$0xf]
      %v1595 = vld [vmem:[%s2 + $0x8] sm:$0xf]
      %v1596 = vld [vmem:[%s2 + $0xc] sm:$0xf]
      %v1597 = vld [vmem:[%s2 + $0x10] sm:$0xf]
      %v1598 = vld [vmem:[%s2 + $0x14] sm:$0xf]
      %v1599 = vld [vmem:[%s2 + $0x18] sm:$0xf]
      %v1600 = vld [vmem:[%s2 + $0x1c] sm:$0xf]
      %v1601 = vld [vmem:[%s2 + $0x20] sm:$0xf]
      %v1602 = vld [vmem:[%s2 + $0x24] sm:$0xf]
      %v1603 = vld [vmem:[%s2 + $0x28] sm:$0xf]
      %v1604 = vld [vmem:[%s2 + $0x2c] sm:$0xf]
      %v1605 = vld [vmem:[%s2 + $0x30] sm:$0xf]
      %v1606 = vld [vmem:[%s2 + $0x34] sm:$0xf]
      %v1607 = vld [vmem:[%s2 + $0x38] sm:$0xf]
      %v1608 = vld [vmem:[%s2 + $0x3c] sm:$0xf]
      %v1625 = vunpack.c.l.b16 %v1593
      %v1626 = vunpack.c.l.b16 %v1594
      %v1627 = vunpack.c.l.b16 %v1595
      %v1628 = vunpack.c.l.b16 %v1596
      %v1629 = vunpack.c.l.b16 %v1597
      %v1630 = vunpack.c.l.b16 %v1598
      %v1631 = vunpack.c.l.b16 %v1599
      %v1632 = vunpack.c.l.b16 %v1600
      %v1633 = vunpack.c.l.b16 %v1601
      %v1634 = vunpack.c.l.b16 %v1602
      %v1635 = vunpack.c.l.b16 %v1603
      %v1636 = vunpack.c.l.b16 %v1604
      %v1637 = vunpack.c.l.b16 %v1605
      %v1638 = vunpack.c.l.b16 %v1606
      %v1639 = vunpack.c.l.b16 %v1607
      %v1640 = vunpack.c.l.b16 %v1608
      %v1641 = vpack.c.b16 %v1626, %v1625
      %v1642 = vpack.c.b16 %v1628, %v1627
      %v1643 = vpack.c.b16 %v1630, %v1629
      %v1644 = vpack.c.b16 %v1632, %v1631
      %v1645 = vpack.c.b16 %v1634, %v1633
      %v1646 = vpack.c.b16 %v1636, %v1635
      %v1647 = vpack.c.b16 %v1638, %v1637
      %v1648 = vpack.c.b16 %v1640, %v1639
      %1657 = vmatprep.subr.bf16.mxu0 0
      %1658 = vmatpush1.bf16.msra.mxu0 %v1641
      %1659 = vmatprep.subr.bf16.mxu0 0
      %1660 = vmatpush1.bf16.msra.mxu0 %v1642
      %1661 = vmatprep.subr.bf16.mxu0 0
      %1662 = vmatpush1.bf16.msra.mxu0 %v1643
      %1663 = vmatprep.subr.bf16.mxu0 0
      %1664 = vmatpush1.bf16.msra.mxu0 %v1644
      %1665 = vmatprep.subr.bf16.mxu0 0
      %1666 = vmatpush1.bf16.msra.mxu0 %v1645
      %1667 = vmatprep.subr.bf16.mxu0 0
      %1668 = vmatpush1.bf16.msra.mxu0 %v1646
      %1669 = vmatprep.subr.bf16.mxu0 0
      %1670 = vmatpush1.bf16.msra.mxu0 %v1647
      %1671 = vmatprep.subr.bf16.mxu0 0
      %1672 = vmatpush1.bf16.msra.mxu0 %v1648
      %1673 = vmatprep.subr.bf16.mxu0 0
      %1674 = vmatpush1.bf16.msra.mxu0 0
      %1675 = vmatprep.subr.bf16.mxu0 0
      %1676 = vmatpush1.bf16.msra.mxu0 0
      %1677 = vmatprep.subr.bf16.mxu0 0
      %1678 = vmatpush1.bf16.msra.mxu0 0
      %1679 = vmatprep.subr.bf16.mxu0 0
      %1680 = vmatpush1.bf16.msra.mxu0 0
      %1681 = vmatprep.subr.bf16.mxu0 0
      %1682 = vmatpush1.bf16.msra.mxu0 0
      %1683 = vmatprep.subr.bf16.mxu0 0
      %1684 = vmatpush1.bf16.msra.mxu0 0
      %1685 = vmatprep.subr.bf16.mxu0 0
      %1686 = vmatpush1.bf16.msra.mxu0 0
      %1687 = vmatprep.subr.bf16.mxu0 0
      %1688 = vmatpush1.bf16.msra.mxu0 0
      %1689 = vmatprep.mubr.bf16.mxu0 0
      %1690 = vmatmul.mubr.bf16.gmra.mrb[0].mxu0 %v1529
      %v1691 = vpop.f32.mrb[0].mxu0
      %v1692 = vadd.f32 0.0, %v1691
      %v1693 = vpop.f32.mrb[0].mxu0
      %v1694 = vpop.f32.mrb[0].mxu0
      %v1695 = vadd.f32 0.0, %v1694
      %v1696 = vpop.f32.mrb[0].mxu0
      %1697 = vmatprep.mubr.bf16.mxu0 0
      %1698 = vmatmul.mubr.bf16.gmra.mrb[0].mxu0 %v1530
      %v1699 = vpop.f32.mrb[0].mxu0
      %v1700 = vadd.f32 0.0, %v1699
      %v1701 = vpop.f32.mrb[0].mxu0
      %v1702 = vpop.f32.mrb[0].mxu0
      %v1703 = vadd.f32 0.0, %v1702
      %v1704 = vpop.f32.mrb[0].mxu0
      %1705 = vmatprep.mubr.bf16.mxu0 0
      %1706 = vmatmul.mubr.bf16.gmra.mrb[0].mxu0 %v1531
      %v1707 = vpop.f32.mrb[0].mxu0
      %v1708 = vadd.f32 0.0, %v1707
      %v1709 = vpop.f32.mrb[0].mxu0
      %v1710 = vpop.f32.mrb[0].mxu0
      %v1711 = vadd.f32 0.0, %v1710
      %v1712 = vpop.f32.mrb[0].mxu0
      %1713 = vmatprep.mubr.bf16.mxu0 0
      %1714 = vmatmul.mubr.bf16.gmra.mrb[0].mxu0 %v1532
      %v1715 = vpop.f32.mrb[0].mxu0
      %v1716 = vadd.f32 0.0, %v1715
      %v1717 = vpop.f32.mrb[0].mxu0
      %v1718 = vpop.f32.mrb[0].mxu0
      %v1719 = vadd.f32 0.0, %v1718
      %v1720 = vpop.f32.mrb[0].mxu0
      %1721 = vmatprep.mubr.bf16.mxu0 0
      %1722 = vmatmul.mubr.bf16.gmra.mrb[0].mxu0 %v1533
      %v1723 = vpop.f32.mrb[0].mxu0
      %v1724 = vadd.f32 0.0, %v1723
      %v1725 = vpop.f32.mrb[0].mxu0
      %v1726 = vpop.f32.mrb[0].mxu0
      %v1727 = vadd.f32 0.0, %v1726
      %v1728 = vpop.f32.mrb[0].mxu0
      %1729 = vmatprep.mubr.bf16.mxu0 0
      %1730 = vmatmul.mubr.bf16.gmra.mrb[0].mxu0 %v1534
      %v1731 = vpop.f32.mrb[0].mxu0
      %v1732 = vadd.f32 0.0, %v1731
      %v1733 = vpop.f32.mrb[0].mxu0
      %v1734 = vpop.f32.mrb[0].mxu0
      %v1735 = vadd.f32 0.0, %v1734
      %v1736 = vpop.f32.mrb[0].mxu0
      %1737 = vmatprep.mubr.bf16.mxu0 0
      %1738 = vmatmul.mubr.bf16.gmra.mrb[0].mxu0 %v1535
      %v1739 = vpop.f32.mrb[0].mxu0
      %v1740 = vadd.f32 0.0, %v1739
      %v1741 = vpop.f32.mrb[0].mxu0
      %v1742 = vpop.f32.mrb[0].mxu0
      %v1743 = vadd.f32 0.0, %v1742
      %v1744 = vpop.f32.mrb[0].mxu0
      %1745 = vmatprep.mubr.bf16.mxu0 0
      %1746 = vmatmul.mubr.bf16.gmra.mrb[0].mxu0 %v1536
      %v1747 = vpop.f32.mrb[0].mxu0
      %v1748 = vadd.f32 0.0, %v1747
      %v1749 = vpop.f32.mrb[0].mxu0
      %v1750 = vpop.f32.mrb[0].mxu0
      %v1751 = vadd.f32 0.0, %v1750
      %v1752 = vpop.f32.mrb[0].mxu0
      %1753 = vmatprep.mubr.bf16.mxu0 0
      %1754 = vmatmul.mubr.bf16.gmra.mrb[0].mxu0 %v1537
      %v1755 = vpop.f32.mrb[0].mxu0
      %v1756 = vadd.f32 0.0, %v1755
      %v1757 = vpop.f32.mrb[0].mxu0
      %v1758 = vpop.f32.mrb[0].mxu0
      %v1759 = vadd.f32 0.0, %v1758
      %v1760 = vpop.f32.mrb[0].mxu0
      %1761 = vmatprep.mubr.bf16.mxu0 0
      %1762 = vmatmul.mubr.bf16.gmra.mrb[0].mxu0 %v1538
      %v1763 = vpop.f32.mrb[0].mxu0
      %v1764 = vadd.f32 0.0, %v1763
      %v1765 = vpop.f32.mrb[0].mxu0
      %v1766 = vpop.f32.mrb[0].mxu0
      %v1767 = vadd.f32 0.0, %v1766
      %v1768 = vpop.f32.mrb[0].mxu0
      %1769 = vmatprep.mubr.bf16.mxu0 0
      %1770 = vmatmul.mubr.bf16.gmra.mrb[0].mxu0 %v1539
      %v1771 = vpop.f32.mrb[0].mxu0
      %v1772 = vadd.f32 0.0, %v1771
      %v1773 = vpop.f32.mrb[0].mxu0
      %v1774 = vpop.f32.mrb[0].mxu0
      %v1775 = vadd.f32 0.0, %v1774
      %v1776 = vpop.f32.mrb[0].mxu0
      %1777 = vmatprep.mubr.bf16.mxu0 0
      %1778 = vmatmul.mubr.bf16.gmra.mrb[0].mxu0 %v1540
      %v1779 = vpop.f32.mrb[0].mxu0
      %v1780 = vadd.f32 0.0, %v1779
      %v1781 = vpop.f32.mrb[0].mxu0
      %v1782 = vpop.f32.mrb[0].mxu0
      %v1783 = vadd.f32 0.0, %v1782
      %v1784 = vpop.f32.mrb[0].mxu0
      %1785 = vmatprep.mubr.bf16.mxu0 0
      %1786 = vmatmul.mubr.bf16.gmra.mrb[0].mxu0 %v1541
      %v1787 = vpop.f32.mrb[0].mxu0
      %v1788 = vadd.f32 0.0, %v1787
      %v1789 = vpop.f32.mrb[0].mxu0
      %v1790 = vpop.f32.mrb[0].mxu0
      %v1791 = vadd.f32 0.0, %v1790
      %v1792 = vpop.f32.mrb[0].mxu0
      %1793 = vmatprep.mubr.bf16.mxu0 0
      %1794 = vmatmul.mubr.bf16.gmra.mrb[0].mxu0 %v1542
      %v1795 = vpop.f32.mrb[0].mxu0
      %v1796 = vadd.f32 0.0, %v1795
      %v1797 = vpop.f32.mrb[0].mxu0
      %v1798 = vpop.f32.mrb[0].mxu0
      %v1799 = vadd.f32 0.0, %v1798
      %v1800 = vpop.f32.mrb[0].mxu0
      %1801 = vmatprep.mubr.bf16.mxu0 0
      %1802 = vmatmul.mubr.bf16.gmra.mrb[0].mxu0 %v1543
      %v1803 = vpop.f32.mrb[0].mxu0
      %v1804 = vadd.f32 0.0, %v1803
      %v1805 = vpop.f32.mrb[0].mxu0
      %v1806 = vpop.f32.mrb[0].mxu0
      %v1807 = vadd.f32 0.0, %v1806
      %v1808 = vpop.f32.mrb[0].mxu0
      %1809 = vmatprep.mubr.bf16.mxu0 0
      %1810 = vmatmul.mubr.bf16.gmra.mrb[0].mxu0 %v1544
      %v1811 = vpop.f32.mrb[0].mxu0
      %v1812 = vadd.f32 0.0, %v1811
      %v1813 = vpop.f32.mrb[0].mxu0
      %v1814 = vpop.f32.mrb[0].mxu0
      %v1815 = vadd.f32 0.0, %v1814
      %v1816 = vpop.f32.mrb[0].mxu0
      %1817 = vmatprep.mubr.bf16.mxu0 0
      %1818 = vmatmul.mubr.bf16.gmra.mrb[0].mxu0 %v1545
      %v1819 = vpop.f32.mrb[0].mxu0
      %v1820 = vadd.f32 0.0, %v1819
      %v1821 = vpop.f32.mrb[0].mxu0
      %v1822 = vpop.f32.mrb[0].mxu0
      %v1823 = vadd.f32 0.0, %v1822
      %v1824 = vpop.f32.mrb[0].mxu0
      %1825 = vmatprep.mubr.bf16.mxu0 0
      %1826 = vmatmul.mubr.bf16.gmra.mrb[0].mxu0 %v1546
      %v1827 = vpop.f32.mrb[0].mxu0
      %v1828 = vadd.f32 0.0, %v1827
      %v1829 = vpop.f32.mrb[0].mxu0
      %v1830 = vpop.f32.mrb[0].mxu0
      %v1831 = vadd.f32 0.0, %v1830
      %v1832 = vpop.f32.mrb[0].mxu0
      %1833 = vmatprep.mubr.bf16.mxu0 0
      %1834 = vmatmul.mubr.bf16.gmra.mrb[0].mxu0 %v1547
      %v1835 = vpop.f32.mrb[0].mxu0
      %v1836 = vadd.f32 0.0, %v1835
      %v1837 = vpop.f32.mrb[0].mxu0
      %v1838 = vpop.f32.mrb[0].mxu0
      %v1839 = vadd.f32 0.0, %v1838
      %v1840 = vpop.f32.mrb[0].mxu0
      %1841 = vmatprep.mubr.bf16.mxu0 0
      %1842 = vmatmul.mubr.bf16.gmra.mrb[0].mxu0 %v1548
      %v1843 = vpop.f32.mrb[0].mxu0
      %v1844 = vadd.f32 0.0, %v1843
      %v1845 = vpop.f32.mrb[0].mxu0
      %v1846 = vpop.f32.mrb[0].mxu0
      %v1847 = vadd.f32 0.0, %v1846
      %v1848 = vpop.f32.mrb[0].mxu0
      %1849 = vmatprep.mubr.bf16.mxu0 0
      %1850 = vmatmul.mubr.bf16.gmra.mrb[0].mxu0 %v1549
      %v1851 = vpop.f32.mrb[0].mxu0
      %v1852 = vadd.f32 0.0, %v1851
      %v1853 = vpop.f32.mrb[0].mxu0
      %v1854 = vpop.f32.mrb[0].mxu0
      %v1855 = vadd.f32 0.0, %v1854
      %v1856 = vpop.f32.mrb[0].mxu0
      %1857 = vmatprep.mubr.bf16.mxu0 0
      %1858 = vmatmul.mubr.bf16.gmra.mrb[0].mxu0 %v1550
      %v1859 = vpop.f32.mrb[0].mxu0
      %v1860 = vadd.f32 0.0, %v1859
      %v1861 = vpop.f32.mrb[0].mxu0
      %v1862 = vpop.f32.mrb[0].mxu0
      %v1863 = vadd.f32 0.0, %v1862
      %v1864 = vpop.f32.mrb[0].mxu0
      %1865 = vmatprep.mubr.bf16.mxu0 0
      %1866 = vmatmul.mubr.bf16.gmra.mrb[0].mxu0 %v1551
      %v1867 = vpop.f32.mrb[0].mxu0
      %v1868 = vadd.f32 0.0, %v1867
      %v1869 = vpop.f32.mrb[0].mxu0
      %v1870 = vpop.f32.mrb[0].mxu0
      %v1871 = vadd.f32 0.0, %v1870
      %v1872 = vpop.f32.mrb[0].mxu0
      %1873 = vmatprep.mubr.bf16.mxu0 0
      %1874 = vmatmul.mubr.bf16.gmra.mrb[0].mxu0 %v1552
      %v1875 = vpop.f32.mrb[0].mxu0
      %v1876 = vadd.f32 0.0, %v1875
      %v1877 = vpop.f32.mrb[0].mxu0
      %v1878 = vpop.f32.mrb[0].mxu0
      %v1879 = vadd.f32 0.0, %v1878
      %v1880 = vpop.f32.mrb[0].mxu0
      %1881 = vmatprep.mubr.bf16.mxu0 0
      %1882 = vmatmul.mubr.bf16.gmra.mrb[0].mxu0 %v1553
      %v1883 = vpop.f32.mrb[0].mxu0
      %v1884 = vadd.f32 0.0, %v1883
      %v1885 = vpop.f32.mrb[0].mxu0
      %v1886 = vpop.f32.mrb[0].mxu0
      %v1887 = vadd.f32 0.0, %v1886
      %v1888 = vpop.f32.mrb[0].mxu0
      %1889 = vmatprep.mubr.bf16.mxu0 0
      %1890 = vmatmul.mubr.bf16.gmra.mrb[0].mxu0 %v1554
      %v1891 = vpop.f32.mrb[0].mxu0
      %v1892 = vadd.f32 0.0, %v1891
      %v1893 = vpop.f32.mrb[0].mxu0
      %v1894 = vpop.f32.mrb[0].mxu0
      %v1895 = vadd.f32 0.0, %v1894
      %v1896 = vpop.f32.mrb[0].mxu0
      %1897 = vmatprep.mubr.bf16.mxu0 0
      %1898 = vmatmul.mubr.bf16.gmra.mrb[0].mxu0 %v1555
      %v1899 = vpop.f32.mrb[0].mxu0
      %v1900 = vadd.f32 0.0, %v1899
      %v1901 = vpop.f32.mrb[0].mxu0
      %v1902 = vpop.f32.mrb[0].mxu0
      %v1903 = vadd.f32 0.0, %v1902
      %v1904 = vpop.f32.mrb[0].mxu0
      %1905 = vmatprep.mubr.bf16.mxu0 0
      %1906 = vmatmul.mubr.bf16.gmra.mrb[0].mxu0 %v1556
      %v1907 = vpop.f32.mrb[0].mxu0
      %v1908 = vadd.f32 0.0, %v1907
      %v1909 = vpop.f32.mrb[0].mxu0
      %v1910 = vpop.f32.mrb[0].mxu0
      %v1911 = vadd.f32 0.0, %v1910
      %v1912 = vpop.f32.mrb[0].mxu0
      %1913 = vmatprep.mubr.bf16.mxu0 0
      %1914 = vmatmul.mubr.bf16.gmra.mrb[0].mxu0 %v1557
      %v1915 = vpop.f32.mrb[0].mxu0
      %v1916 = vadd.f32 0.0, %v1915
      %v1917 = vpop.f32.mrb[0].mxu0
      %v1918 = vpop.f32.mrb[0].mxu0
      %v1919 = vadd.f32 0.0, %v1918
      %v1920 = vpop.f32.mrb[0].mxu0
      %1921 = vmatprep.mubr.bf16.mxu0 0
      %1922 = vmatmul.mubr.bf16.gmra.mrb[0].mxu0 %v1558
      %v1923 = vpop.f32.mrb[0].mxu0
      %v1924 = vadd.f32 0.0, %v1923
      %v1925 = vpop.f32.mrb[0].mxu0
      %v1926 = vpop.f32.mrb[0].mxu0
      %v1927 = vadd.f32 0.0, %v1926
      %v1928 = vpop.f32.mrb[0].mxu0
      %1929 = vmatprep.mubr.bf16.mxu0 0
      %1930 = vmatmul.mubr.bf16.gmra.mrb[0].mxu0 %v1559
      %v1931 = vpop.f32.mrb[0].mxu0
      %v1932 = vadd.f32 0.0, %v1931
      %v1933 = vpop.f32.mrb[0].mxu0
      %v1934 = vpop.f32.mrb[0].mxu0
      %v1935 = vadd.f32 0.0, %v1934
      %v1936 = vpop.f32.mrb[0].mxu0
      %1937 = vmatprep.mubr.bf16.mxu0 0
      %1938 = vmatmul.mubr.bf16.gmra.mrb[0].mxu0 %v1560
      %v1939 = vpop.f32.mrb[0].mxu0
      %v1940 = vadd.f32 0.0, %v1939
      %v1941 = vpop.f32.mrb[0].mxu0
      %v1942 = vpop.f32.mrb[0].mxu0
      %v1943 = vadd.f32 0.0, %v1942
      %v1944 = vpop.f32.mrb[0].mxu0
      %1945 = vmatprep.mubr.bf16.mxu0 0
      %1946 = vmatmul.mubr.bf16.gmra.mrb[0].mxu0 %v1561
      %v1947 = vpop.f32.mrb[0].mxu0
      %v1948 = vadd.f32 0.0, %v1947
      %v1949 = vpop.f32.mrb[0].mxu0
      %v1950 = vpop.f32.mrb[0].mxu0
      %v1951 = vadd.f32 0.0, %v1950
      %v1952 = vpop.f32.mrb[0].mxu0
      %1953 = vmatprep.mubr.bf16.mxu0 0
      %1954 = vmatmul.mubr.bf16.gmra.mrb[0].mxu0 %v1562
      %v1955 = vpop.f32.mrb[0].mxu0
      %v1956 = vadd.f32 0.0, %v1955
      %v1957 = vpop.f32.mrb[0].mxu0
      %v1958 = vpop.f32.mrb[0].mxu0
      %v1959 = vadd.f32 0.0, %v1958
      %v1960 = vpop.f32.mrb[0].mxu0
      %1961 = vmatprep.mubr.bf16.mxu0 0
      %1962 = vmatmul.mubr.bf16.gmra.mrb[0].mxu0 %v1563
      %v1963 = vpop.f32.mrb[0].mxu0
      %v1964 = vadd.f32 0.0, %v1963
      %v1965 = vpop.f32.mrb[0].mxu0
      %v1966 = vpop.f32.mrb[0].mxu0
      %v1967 = vadd.f32 0.0, %v1966
      %v1968 = vpop.f32.mrb[0].mxu0
      %1969 = vmatprep.mubr.bf16.mxu0 0
      %1970 = vmatmul.mubr.bf16.gmra.mrb[0].mxu0 %v1564
      %v1971 = vpop.f32.mrb[0].mxu0
      %v1972 = vadd.f32 0.0, %v1971
      %v1973 = vpop.f32.mrb[0].mxu0
      %v1974 = vpop.f32.mrb[0].mxu0
      %v1975 = vadd.f32 0.0, %v1974
      %v1976 = vpop.f32.mrb[0].mxu0
      %1977 = vmatprep.mubr.bf16.mxu0 0
      %1978 = vmatmul.mubr.bf16.gmra.mrb[0].mxu0 %v1565
      %v1979 = vpop.f32.mrb[0].mxu0
      %v1980 = vadd.f32 0.0, %v1979
      %v1981 = vpop.f32.mrb[0].mxu0
      %v1982 = vpop.f32.mrb[0].mxu0
      %v1983 = vadd.f32 0.0, %v1982
      %v1984 = vpop.f32.mrb[0].mxu0
      %1985 = vmatprep.mubr.bf16.mxu0 0
      %1986 = vmatmul.mubr.bf16.gmra.mrb[0].mxu0 %v1566
      %v1987 = vpop.f32.mrb[0].mxu0
      %v1988 = vadd.f32 0.0, %v1987
      %v1989 = vpop.f32.mrb[0].mxu0
      %v1990 = vpop.f32.mrb[0].mxu0
      %v1991 = vadd.f32 0.0, %v1990
      %v1992 = vpop.f32.mrb[0].mxu0
      %1993 = vmatprep.mubr.bf16.mxu0 0
      %1994 = vmatmul.mubr.bf16.gmra.mrb[0].mxu0 %v1567
      %v1995 = vpop.f32.mrb[0].mxu0
      %v1996 = vadd.f32 0.0, %v1995
      %v1997 = vpop.f32.mrb[0].mxu0
      %v1998 = vpop.f32.mrb[0].mxu0
      %v1999 = vadd.f32 0.0, %v1998
      %v2000 = vpop.f32.mrb[0].mxu0
      %2001 = vmatprep.mubr.bf16.mxu0 0
      %2002 = vmatmul.mubr.bf16.gmra.mrb[0].mxu0 %v1568
      %v2003 = vpop.f32.mrb[0].mxu0
      %v2004 = vadd.f32 0.0, %v2003
      %v2005 = vpop.f32.mrb[0].mxu0
      %v2006 = vpop.f32.mrb[0].mxu0
      %v2007 = vadd.f32 0.0, %v2006
      %v2008 = vpop.f32.mrb[0].mxu0
      %2009 = vmatprep.mubr.bf16.mxu0 0
      %2010 = vmatmul.mubr.bf16.gmra.mrb[0].mxu0 %v1569
      %v2011 = vpop.f32.mrb[0].mxu0
      %v2012 = vadd.f32 0.0, %v2011
      %v2013 = vpop.f32.mrb[0].mxu0
      %v2014 = vpop.f32.mrb[0].mxu0
      %v2015 = vadd.f32 0.0, %v2014
      %v2016 = vpop.f32.mrb[0].mxu0
      %2017 = vmatprep.mubr.bf16.mxu0 0
      %2018 = vmatmul.mubr.bf16.gmra.mrb[0].mxu0 %v1570
      %v2019 = vpop.f32.mrb[0].mxu0
      %v2020 = vadd.f32 0.0, %v2019
      %v2021 = vpop.f32.mrb[0].mxu0
      %v2022 = vpop.f32.mrb[0].mxu0
      %v2023 = vadd.f32 0.0, %v2022
      %v2024 = vpop.f32.mrb[0].mxu0
      %2025 = vmatprep.mubr.bf16.mxu0 0
      %2026 = vmatmul.mubr.bf16.gmra.mrb[0].mxu0 %v1571
      %v2027 = vpop.f32.mrb[0].mxu0
      %v2028 = vadd.f32 0.0, %v2027
      %v2029 = vpop.f32.mrb[0].mxu0
      %v2030 = vpop.f32.mrb[0].mxu0
      %v2031 = vadd.f32 0.0, %v2030
      %v2032 = vpop.f32.mrb[0].mxu0
      %2033 = vmatprep.mubr.bf16.mxu0 0
      %2034 = vmatmul.mubr.bf16.gmra.mrb[0].mxu0 %v1572
      %v2035 = vpop.f32.mrb[0].mxu0
      %v2036 = vadd.f32 0.0, %v2035
      %v2037 = vpop.f32.mrb[0].mxu0
      %v2038 = vpop.f32.mrb[0].mxu0
      %v2039 = vadd.f32 0.0, %v2038
      %v2040 = vpop.f32.mrb[0].mxu0
      %2041 = vmatprep.mubr.bf16.mxu0 0
      %2042 = vmatmul.mubr.bf16.gmra.mrb[0].mxu0 %v1573
      %v2043 = vpop.f32.mrb[0].mxu0
      %v2044 = vadd.f32 0.0, %v2043
      %v2045 = vpop.f32.mrb[0].mxu0
      %v2046 = vpop.f32.mrb[0].mxu0
      %v2047 = vadd.f32 0.0, %v2046
      %v2048 = vpop.f32.mrb[0].mxu0
      %2049 = vmatprep.mubr.bf16.mxu0 0
      %2050 = vmatmul.mubr.bf16.gmra.mrb[0].mxu0 %v1574
      %v2051 = vpop.f32.mrb[0].mxu0
      %v2052 = vadd.f32 0.0, %v2051
      %v2053 = vpop.f32.mrb[0].mxu0
      %v2054 = vpop.f32.mrb[0].mxu0
      %v2055 = vadd.f32 0.0, %v2054
      %v2056 = vpop.f32.mrb[0].mxu0
      %2057 = vmatprep.mubr.bf16.mxu0 0
      %2058 = vmatmul.mubr.bf16.gmra.mrb[0].mxu0 %v1575
      %v2059 = vpop.f32.mrb[0].mxu0
      %v2060 = vadd.f32 0.0, %v2059
      %v2061 = vpop.f32.mrb[0].mxu0
      %v2062 = vpop.f32.mrb[0].mxu0
      %v2063 = vadd.f32 0.0, %v2062
      %v2064 = vpop.f32.mrb[0].mxu0
      %2065 = vmatprep.mubr.bf16.mxu0 0
      %2066 = vmatmul.mubr.bf16.gmra.mrb[0].mxu0 %v1576
      %v2067 = vpop.f32.mrb[0].mxu0
      %v2068 = vadd.f32 0.0, %v2067
      %v2069 = vpop.f32.mrb[0].mxu0
      %v2070 = vpop.f32.mrb[0].mxu0
      %v2071 = vadd.f32 0.0, %v2070
      %v2072 = vpop.f32.mrb[0].mxu0
      %2073 = vmatprep.mubr.bf16.mxu0 0
      %2074 = vmatmul.mubr.bf16.gmra.mrb[0].mxu0 %v1577
      %v2075 = vpop.f32.mrb[0].mxu0
      %v2076 = vadd.f32 0.0, %v2075
      %v2077 = vpop.f32.mrb[0].mxu0
      %v2078 = vpop.f32.mrb[0].mxu0
      %v2079 = vadd.f32 0.0, %v2078
      %v2080 = vpop.f32.mrb[0].mxu0
      %2081 = vmatprep.mubr.bf16.mxu0 0
      %2082 = vmatmul.mubr.bf16.gmra.mrb[0].mxu0 %v1578
      %v2083 = vpop.f32.mrb[0].mxu0
      %v2084 = vadd.f32 0.0, %v2083
      %v2085 = vpop.f32.mrb[0].mxu0
      %v2086 = vpop.f32.mrb[0].mxu0
      %v2087 = vadd.f32 0.0, %v2086
      %v2088 = vpop.f32.mrb[0].mxu0
      %2089 = vmatprep.mubr.bf16.mxu0 0
      %2090 = vmatmul.mubr.bf16.gmra.mrb[0].mxu0 %v1579
      %v2091 = vpop.f32.mrb[0].mxu0
      %v2092 = vadd.f32 0.0, %v2091
      %v2093 = vpop.f32.mrb[0].mxu0
      %v2094 = vpop.f32.mrb[0].mxu0
      %v2095 = vadd.f32 0.0, %v2094
      %v2096 = vpop.f32.mrb[0].mxu0
      %2097 = vmatprep.mubr.bf16.mxu0 0
      %2098 = vmatmul.mubr.bf16.gmra.mrb[0].mxu0 %v1580
      %v2099 = vpop.f32.mrb[0].mxu0
      %v2100 = vadd.f32 0.0, %v2099
      %v2101 = vpop.f32.mrb[0].mxu0
      %v2102 = vpop.f32.mrb[0].mxu0
      %v2103 = vadd.f32 0.0, %v2102
      %v2104 = vpop.f32.mrb[0].mxu0
      %2105 = vmatprep.mubr.bf16.mxu0 0
      %2106 = vmatmul.mubr.bf16.gmra.mrb[0].mxu0 %v1581
      %v2107 = vpop.f32.mrb[0].mxu0
      %v2108 = vadd.f32 0.0, %v2107
      %v2109 = vpop.f32.mrb[0].mxu0
      %v2110 = vpop.f32.mrb[0].mxu0
      %v2111 = vadd.f32 0.0, %v2110
      %v2112 = vpop.f32.mrb[0].mxu0
      %2113 = vmatprep.mubr.bf16.mxu0 0
      %2114 = vmatmul.mubr.bf16.gmra.mrb[0].mxu0 %v1582
      %v2115 = vpop.f32.mrb[0].mxu0
      %v2116 = vadd.f32 0.0, %v2115
      %v2117 = vpop.f32.mrb[0].mxu0
      %v2118 = vpop.f32.mrb[0].mxu0
      %v2119 = vadd.f32 0.0, %v2118
      %v2120 = vpop.f32.mrb[0].mxu0
      %2121 = vmatprep.mubr.bf16.mxu0 0
      %2122 = vmatmul.mubr.bf16.gmra.mrb[0].mxu0 %v1583
      %v2123 = vpop.f32.mrb[0].mxu0
      %v2124 = vadd.f32 0.0, %v2123
      %v2125 = vpop.f32.mrb[0].mxu0
      %v2126 = vpop.f32.mrb[0].mxu0
      %v2127 = vadd.f32 0.0, %v2126
      %v2128 = vpop.f32.mrb[0].mxu0
      %2129 = vmatprep.mubr.bf16.mxu0 0
      %2130 = vmatmul.mubr.bf16.gmra.mrb[0].mxu0 %v1584
      %v2131 = vpop.f32.mrb[0].mxu0
      %v2132 = vadd.f32 0.0, %v2131
      %v2133 = vpop.f32.mrb[0].mxu0
      %v2134 = vpop.f32.mrb[0].mxu0
      %v2135 = vadd.f32 0.0, %v2134
      %v2136 = vpop.f32.mrb[0].mxu0
      %2137 = vmatprep.mubr.bf16.mxu0 0
      %2138 = vmatmul.mubr.bf16.gmra.mrb[0].mxu0 %v1585
      %v2139 = vpop.f32.mrb[0].mxu0
      %v2140 = vadd.f32 0.0, %v2139
      %v2141 = vpop.f32.mrb[0].mxu0
      %v2142 = vpop.f32.mrb[0].mxu0
      %v2143 = vadd.f32 0.0, %v2142
      %v2144 = vpop.f32.mrb[0].mxu0
      %2145 = vmatprep.mubr.bf16.mxu0 0
      %2146 = vmatmul.mubr.bf16.gmra.mrb[0].mxu0 %v1586
      %v2147 = vpop.f32.mrb[0].mxu0
      %v2148 = vadd.f32 0.0, %v2147
      %v2149 = vpop.f32.mrb[0].mxu0
      %v2150 = vpop.f32.mrb[0].mxu0
      %v2151 = vadd.f32 0.0, %v2150
      %v2152 = vpop.f32.mrb[0].mxu0
      %2153 = vmatprep.mubr.bf16.mxu0 0
      %2154 = vmatmul.mubr.bf16.gmra.mrb[0].mxu0 %v1587
      %v2155 = vpop.f32.mrb[0].mxu0
      %v2156 = vadd.f32 0.0, %v2155
      %v2157 = vpop.f32.mrb[0].mxu0
      %v2158 = vpop.f32.mrb[0].mxu0
      %v2159 = vadd.f32 0.0, %v2158
      %v2160 = vpop.f32.mrb[0].mxu0
      %2161 = vmatprep.mubr.bf16.mxu0 0
      %2162 = vmatmul.mubr.bf16.gmra.mrb[0].mxu0 %v1588
      %v2163 = vpop.f32.mrb[0].mxu0
      %v2164 = vadd.f32 0.0, %v2163
      %v2165 = vpop.f32.mrb[0].mxu0
      %v2166 = vpop.f32.mrb[0].mxu0
      %v2167 = vadd.f32 0.0, %v2166
      %v2168 = vpop.f32.mrb[0].mxu0
      %2169 = vmatprep.mubr.bf16.mxu0 0
      %2170 = vmatmul.mubr.bf16.gmra.mrb[0].mxu0 %v1589
      %v2171 = vpop.f32.mrb[0].mxu0
      %v2172 = vadd.f32 0.0, %v2171
      %v2173 = vpop.f32.mrb[0].mxu0
      %v2174 = vpop.f32.mrb[0].mxu0
      %v2175 = vadd.f32 0.0, %v2174
      %v2176 = vpop.f32.mrb[0].mxu0
      %2177 = vmatprep.mubr.bf16.mxu0 0
      %2178 = vmatmul.mubr.bf16.gmra.mrb[0].mxu0 %v1590
      %v2179 = vpop.f32.mrb[0].mxu0
      %v2180 = vadd.f32 0.0, %v2179
      %v2181 = vpop.f32.mrb[0].mxu0
      %v2182 = vpop.f32.mrb[0].mxu0
      %v2183 = vadd.f32 0.0, %v2182
      %v2184 = vpop.f32.mrb[0].mxu0
      %2185 = vmatprep.mubr.bf16.mxu0 0
      %2186 = vmatmul.mubr.bf16.gmra.mrb[0].mxu0 %v1591
      %v2187 = vpop.f32.mrb[0].mxu0
      %v2188 = vadd.f32 0.0, %v2187
      %v2189 = vpop.f32.mrb[0].mxu0
      %v2190 = vpop.f32.mrb[0].mxu0
      %v2191 = vadd.f32 0.0, %v2190
      %v2192 = vpop.f32.mrb[0].mxu0
      %2193 = vmatprep.mubr.bf16.mxu0 0
      %2194 = vmatmul.mubr.bf16.gmra.mrb[0].mxu0 %v1592
      %v2195 = vpop.f32.mrb[0].mxu0
      %v2196 = vadd.f32 0.0, %v2195
      %v2197 = vpop.f32.mrb[0].mxu0
      %v2198 = vpop.f32.mrb[0].mxu0
      %v2199 = vadd.f32 0.0, %v2198
      %v2200 = vpop.f32.mrb[0].mxu0
      %2201 = vdwg.mxu0
      %v2202 = vxor.u32 %v1692, 2147483648
      %v2203 = vxor.u32 %v1695, 2147483648
      %v2204 = vxor.u32 %v1700, 2147483648
      %v2205 = vxor.u32 %v1703, 2147483648
      %v2206 = vxor.u32 %v1708, 2147483648
      %v2207 = vxor.u32 %v1711, 2147483648
      %v2208 = vxor.u32 %v1716, 2147483648
      %v2209 = vxor.u32 %v1719, 2147483648
      %v2210 = vxor.u32 %v1724, 2147483648
      %v2211 = vxor.u32 %v1727, 2147483648
      %v2212 = vxor.u32 %v1732, 2147483648
      %v2213 = vxor.u32 %v1735, 2147483648
      %v2214 = vxor.u32 %v1740, 2147483648
      %v2215 = vxor.u32 %v1743, 2147483648
      %v2216 = vxor.u32 %v1748, 2147483648
      %v2217 = vxor.u32 %v1751, 2147483648
      %v2218 = vxor.u32 %v1756, 2147483648
      %v2219 = vxor.u32 %v1759, 2147483648
      %v2220 = vxor.u32 %v1764, 2147483648
      %v2221 = vxor.u32 %v1767, 2147483648
      %v2222 = vxor.u32 %v1772, 2147483648
      %v2223 = vxor.u32 %v1775, 2147483648
      %v2224 = vxor.u32 %v1780, 2147483648
      %v2225 = vxor.u32 %v1783, 2147483648
      %v2226 = vxor.u32 %v1788, 2147483648
      %v2227 = vxor.u32 %v1791, 2147483648
      %v2228 = vxor.u32 %v1796, 2147483648
      %v2229 = vxor.u32 %v1799, 2147483648
      %v2230 = vxor.u32 %v1804, 2147483648
      %v2231 = vxor.u32 %v1807, 2147483648
      %v2232 = vxor.u32 %v1812, 2147483648
      %v2233 = vxor.u32 %v1815, 2147483648
      %v2234 = vxor.u32 %v1820, 2147483648
      %v2235 = vxor.u32 %v1823, 2147483648
      %v2236 = vxor.u32 %v1828, 2147483648
      %v2237 = vxor.u32 %v1831, 2147483648
      %v2238 = vxor.u32 %v1836, 2147483648
      %v2239 = vxor.u32 %v1839, 2147483648
      %v2240 = vxor.u32 %v1844, 2147483648
      %v2241 = vxor.u32 %v1847, 2147483648
      %v2242 = vxor.u32 %v1852, 2147483648
      %v2243 = vxor.u32 %v1855, 2147483648
      %v2244 = vxor.u32 %v1860, 2147483648
      %v2245 = vxor.u32 %v1863, 2147483648
      %v2246 = vxor.u32 %v1868, 2147483648
      %v2247 = vxor.u32 %v1871, 2147483648
      %v2248 = vxor.u32 %v1876, 2147483648
      %v2249 = vxor.u32 %v1879, 2147483648
      %v2250 = vxor.u32 %v1884, 2147483648
      %v2251 = vxor.u32 %v1887, 2147483648
      %v2252 = vxor.u32 %v1892, 2147483648
      %v2253 = vxor.u32 %v1895, 2147483648
      %v2254 = vxor.u32 %v1900, 2147483648
      %v2255 = vxor.u32 %v1903, 2147483648
      %v2256 = vxor.u32 %v1908, 2147483648
      %v2257 = vxor.u32 %v1911, 2147483648
      %v2258 = vxor.u32 %v1916, 2147483648
      %v2259 = vxor.u32 %v1919, 2147483648
      %v2260 = vxor.u32 %v1924, 2147483648
      %v2261 = vxor.u32 %v1927, 2147483648
      %v2262 = vxor.u32 %v1932, 2147483648
      %v2263 = vxor.u32 %v1935, 2147483648
      %v2264 = vxor.u32 %v1940, 2147483648
      %v2265 = vxor.u32 %v1943, 2147483648
      %v2266 = vxor.u32 %v1948, 2147483648
      %v2267 = vxor.u32 %v1951, 2147483648
      %v2268 = vxor.u32 %v1956, 2147483648
      %v2269 = vxor.u32 %v1959, 2147483648
      %v2270 = vxor.u32 %v1964, 2147483648
      %v2271 = vxor.u32 %v1967, 2147483648
      %v2272 = vxor.u32 %v1972, 2147483648
      %v2273 = vxor.u32 %v1975, 2147483648
      %v2274 = vxor.u32 %v1980, 2147483648
      %v2275 = vxor.u32 %v1983, 2147483648
      %v2276 = vxor.u32 %v1988, 2147483648
      %v2277 = vxor.u32 %v1991, 2147483648
      %v2278 = vxor.u32 %v1996, 2147483648
      %v2279 = vxor.u32 %v1999, 2147483648
      %v2280 = vxor.u32 %v2004, 2147483648
      %v2281 = vxor.u32 %v2007, 2147483648
      %v2282 = vxor.u32 %v2012, 2147483648
      %v2283 = vxor.u32 %v2015, 2147483648
      %v2284 = vxor.u32 %v2020, 2147483648
      %v2285 = vxor.u32 %v2023, 2147483648
      %v2286 = vxor.u32 %v2028, 2147483648
      %v2287 = vxor.u32 %v2031, 2147483648
      %v2288 = vxor.u32 %v2036, 2147483648
      %v2289 = vxor.u32 %v2039, 2147483648
      %v2290 = vxor.u32 %v2044, 2147483648
      %v2291 = vxor.u32 %v2047, 2147483648
      %v2292 = vxor.u32 %v2052, 2147483648
      %v2293 = vxor.u32 %v2055, 2147483648
      %v2294 = vxor.u32 %v2060, 2147483648
      %v2295 = vxor.u32 %v2063, 2147483648
      %v2296 = vxor.u32 %v2068, 2147483648
      %v2297 = vxor.u32 %v2071, 2147483648
      %v2298 = vxor.u32 %v2076, 2147483648
      %v2299 = vxor.u32 %v2079, 2147483648
      %v2300 = vxor.u32 %v2084, 2147483648
      %v2301 = vxor.u32 %v2087, 2147483648
      %v2302 = vxor.u32 %v2092, 2147483648
      %v2303 = vxor.u32 %v2095, 2147483648
      %v2304 = vxor.u32 %v2100, 2147483648
      %v2305 = vxor.u32 %v2103, 2147483648
      %v2306 = vxor.u32 %v2108, 2147483648
      %v2307 = vxor.u32 %v2111, 2147483648
      %v2308 = vxor.u32 %v2116, 2147483648
      %v2309 = vxor.u32 %v2119, 2147483648
      %v2310 = vxor.u32 %v2124, 2147483648
      %v2311 = vxor.u32 %v2127, 2147483648
      %v2312 = vxor.u32 %v2132, 2147483648
      %v2313 = vxor.u32 %v2135, 2147483648
      %v2314 = vxor.u32 %v2140, 2147483648
      %v2315 = vxor.u32 %v2143, 2147483648
      %v2316 = vxor.u32 %v2148, 2147483648
      %v2317 = vxor.u32 %v2151, 2147483648
      %v2318 = vxor.u32 %v2156, 2147483648
      %v2319 = vxor.u32 %v2159, 2147483648
      %v2320 = vxor.u32 %v2164, 2147483648
      %v2321 = vxor.u32 %v2167, 2147483648
      %v2322 = vxor.u32 %v2172, 2147483648
      %v2323 = vxor.u32 %v2175, 2147483648
      %v2324 = vxor.u32 %v2180, 2147483648
      %v2325 = vxor.u32 %v2183, 2147483648
      %v2326 = vxor.u32 %v2188, 2147483648
      %v2327 = vxor.u32 %v2191, 2147483648
      %v2328 = vxor.u32 %v2196, 2147483648
      %v2329 = vxor.u32 %v2199, 2147483648
      %v2330 = vmul.f32 %v2202, 1.442695
      %v2331 = vpow.pop %v2330
      %v2332 = vmul.f32 %v2203, 1.442695
      %v2333 = vpow.pop %v2332
      %v2334 = vmul.f32 %v2204, 1.442695
      %v2335 = vpow.pop %v2334
      %v2336 = vmul.f32 %v2205, 1.442695
      %v2337 = vpow.pop %v2336
      %v2338 = vmul.f32 %v2206, 1.442695
      %v2339 = vpow.pop %v2338
      %v2340 = vmul.f32 %v2207, 1.442695
      %v2341 = vpow.pop %v2340
      %v2342 = vmul.f32 %v2208, 1.442695
      %v2343 = vpow.pop %v2342
      %v2344 = vmul.f32 %v2209, 1.442695
      %v2345 = vpow.pop %v2344
      %v2346 = vmul.f32 %v2210, 1.442695
      %v2347 = vpow.pop %v2346
      %v2348 = vmul.f32 %v2211, 1.442695
      %v2349 = vpow.pop %v2348
      %v2350 = vmul.f32 %v2212, 1.442695
      %v2351 = vpow.pop %v2350
      %v2352 = vmul.f32 %v2213, 1.442695
      %v2353 = vpow.pop %v2352
      %v2354 = vmul.f32 %v2214, 1.442695
      %v2355 = vpow.pop %v2354
      %v2356 = vmul.f32 %v2215, 1.442695
      %v2357 = vpow.pop %v2356
      %v2358 = vmul.f32 %v2216, 1.442695
      %v2359 = vpow.pop %v2358
      %v2360 = vmul.f32 %v2217, 1.442695
      %v2361 = vpow.pop %v2360
      %v2362 = vmul.f32 %v2218, 1.442695
      %v2363 = vpow.pop %v2362
      %v2364 = vmul.f32 %v2219, 1.442695
      %v2365 = vpow.pop %v2364
      %v2366 = vmul.f32 %v2220, 1.442695
      %v2367 = vpow.pop %v2366
      %v2368 = vmul.f32 %v2221, 1.442695
      %v2369 = vpow.pop %v2368
      %v2370 = vmul.f32 %v2222, 1.442695
      %v2371 = vpow.pop %v2370
      %v2372 = vmul.f32 %v2223, 1.442695
      %v2373 = vpow.pop %v2372
      %v2374 = vmul.f32 %v2224, 1.442695
      %v2375 = vpow.pop %v2374
      %v2376 = vmul.f32 %v2225, 1.442695
      %v2377 = vpow.pop %v2376
      %v2378 = vmul.f32 %v2226, 1.442695
      %v2379 = vpow.pop %v2378
      %v2380 = vmul.f32 %v2227, 1.442695
      %v2381 = vpow.pop %v2380
      %v2382 = vmul.f32 %v2228, 1.442695
      %v2383 = vpow.pop %v2382
      %v2384 = vmul.f32 %v2229, 1.442695
      %v2385 = vpow.pop %v2384
      %v2386 = vmul.f32 %v2230, 1.442695
      %v2387 = vpow.pop %v2386
      %v2388 = vmul.f32 %v2231, 1.442695
      %v2389 = vpow.pop %v2388
      %v2390 = vmul.f32 %v2232, 1.442695
      %v2391 = vpow.pop %v2390
      %v2392 = vmul.f32 %v2233, 1.442695
      %v2393 = vpow.pop %v2392
      %v2394 = vmul.f32 %v2234, 1.442695
      %v2395 = vpow.pop %v2394
      %v2396 = vmul.f32 %v2235, 1.442695
      %v2397 = vpow.pop %v2396
      %v2398 = vmul.f32 %v2236, 1.442695
      %v2399 = vpow.pop %v2398
      %v2400 = vmul.f32 %v2237, 1.442695
      %v2401 = vpow.pop %v2400
      %v2402 = vmul.f32 %v2238, 1.442695
      %v2403 = vpow.pop %v2402
      %v2404 = vmul.f32 %v2239, 1.442695
      %v2405 = vpow.pop %v2404
      %v2406 = vmul.f32 %v2240, 1.442695
      %v2407 = vpow.pop %v2406
      %v2408 = vmul.f32 %v2241, 1.442695
      %v2409 = vpow.pop %v2408
      %v2410 = vmul.f32 %v2242, 1.442695
      %v2411 = vpow.pop %v2410
      %v2412 = vmul.f32 %v2243, 1.442695
      %v2413 = vpow.pop %v2412
      %v2414 = vmul.f32 %v2244, 1.442695
      %v2415 = vpow.pop %v2414
      %v2416 = vmul.f32 %v2245, 1.442695
      %v2417 = vpow.pop %v2416
      %v2418 = vmul.f32 %v2246, 1.442695
      %v2419 = vpow.pop %v2418
      %v2420 = vmul.f32 %v2247, 1.442695
      %v2421 = vpow.pop %v2420
      %v2422 = vmul.f32 %v2248, 1.442695
      %v2423 = vpow.pop %v2422
      %v2424 = vmul.f32 %v2249, 1.442695
      %v2425 = vpow.pop %v2424
      %v2426 = vmul.f32 %v2250, 1.442695
      %v2427 = vpow.pop %v2426
      %v2428 = vmul.f32 %v2251, 1.442695
      %v2429 = vpow.pop %v2428
      %v2430 = vmul.f32 %v2252, 1.442695
      %v2431 = vpow.pop %v2430
      %v2432 = vmul.f32 %v2253, 1.442695
      %v2433 = vpow.pop %v2432
      %v2434 = vmul.f32 %v2254, 1.442695
      %v2435 = vpow.pop %v2434
      %v2436 = vmul.f32 %v2255, 1.442695
      %v2437 = vpow.pop %v2436
      %v2438 = vmul.f32 %v2256, 1.442695
      %v2439 = vpow.pop %v2438
      %v2440 = vmul.f32 %v2257, 1.442695
      %v2441 = vpow.pop %v2440
      %v2442 = vmul.f32 %v2258, 1.442695
      %v2443 = vpow.pop %v2442
      %v2444 = vmul.f32 %v2259, 1.442695
      %v2445 = vpow.pop %v2444
      %v2446 = vmul.f32 %v2260, 1.442695
      %v2447 = vpow.pop %v2446
      %v2448 = vmul.f32 %v2261, 1.442695
      %v2449 = vpow.pop %v2448
      %v2450 = vmul.f32 %v2262, 1.442695
      %v2451 = vpow.pop %v2450
      %v2452 = vmul.f32 %v2263, 1.442695
      %v2453 = vpow.pop %v2452
      %v2454 = vmul.f32 %v2264, 1.442695
      %v2455 = vpow.pop %v2454
      %v2456 = vmul.f32 %v2265, 1.442695
      %v2457 = vpow.pop %v2456
      %v2458 = vmul.f32 %v2266, 1.442695
      %v2459 = vpow.pop %v2458
      %v2460 = vmul.f32 %v2267, 1.442695
      %v2461 = vpow.pop %v2460
      %v2462 = vmul.f32 %v2268, 1.442695
      %v2463 = vpow.pop %v2462
      %v2464 = vmul.f32 %v2269, 1.442695
      %v2465 = vpow.pop %v2464
      %v2466 = vmul.f32 %v2270, 1.442695
      %v2467 = vpow.pop %v2466
      %v2468 = vmul.f32 %v2271, 1.442695
      %v2469 = vpow.pop %v2468
      %v2470 = vmul.f32 %v2272, 1.442695
      %v2471 = vpow.pop %v2470
      %v2472 = vmul.f32 %v2273, 1.442695
      %v2473 = vpow.pop %v2472
      %v2474 = vmul.f32 %v2274, 1.442695
      %v2475 = vpow.pop %v2474
      %v2476 = vmul.f32 %v2275, 1.442695
      %v2477 = vpow.pop %v2476
      %v2478 = vmul.f32 %v2276, 1.442695
      %v2479 = vpow.pop %v2478
      %v2480 = vmul.f32 %v2277, 1.442695
      %v2481 = vpow.pop %v2480
      %v2482 = vmul.f32 %v2278, 1.442695
      %v2483 = vpow.pop %v2482
      %v2484 = vmul.f32 %v2279, 1.442695
      %v2485 = vpow.pop %v2484
      %v2486 = vmul.f32 %v2280, 1.442695
      %v2487 = vpow.pop %v2486
      %v2488 = vmul.f32 %v2281, 1.442695
      %v2489 = vpow.pop %v2488
      %v2490 = vmul.f32 %v2282, 1.442695
      %v2491 = vpow.pop %v2490
      %v2492 = vmul.f32 %v2283, 1.442695
      %v2493 = vpow.pop %v2492
      %v2494 = vmul.f32 %v2284, 1.442695
      %v2495 = vpow.pop %v2494
      %v2496 = vmul.f32 %v2285, 1.442695
      %v2497 = vpow.pop %v2496
      %v2498 = vmul.f32 %v2286, 1.442695
      %v2499 = vpow.pop %v2498
      %v2500 = vmul.f32 %v2287, 1.442695
      %v2501 = vpow.pop %v2500
      %v2502 = vmul.f32 %v2288, 1.442695
      %v2503 = vpow.pop %v2502
      %v2504 = vmul.f32 %v2289, 1.442695
      %v2505 = vpow.pop %v2504
      %v2506 = vmul.f32 %v2290, 1.442695
      %v2507 = vpow.pop %v2506
      %v2508 = vmul.f32 %v2291, 1.442695
      %v2509 = vpow.pop %v2508
      %v2510 = vmul.f32 %v2292, 1.442695
      %v2511 = vpow.pop %v2510
      %v2512 = vmul.f32 %v2293, 1.442695
      %v2513 = vpow.pop %v2512
      %v2514 = vmul.f32 %v2294, 1.442695
      %v2515 = vpow.pop %v2514
      %v2516 = vmul.f32 %v2295, 1.442695
      %v2517 = vpow.pop %v2516
      %v2518 = vmul.f32 %v2296, 1.442695
      %v2519 = vpow.pop %v2518
      %v2520 = vmul.f32 %v2297, 1.442695
      %v2521 = vpow.pop %v2520
      %v2522 = vmul.f32 %v2298, 1.442695
      %v2523 = vpow.pop %v2522
      %v2524 = vmul.f32 %v2299, 1.442695
      %v2525 = vpow.pop %v2524
      %v2526 = vmul.f32 %v2300, 1.442695
      %v2527 = vpow.pop %v2526
      %v2528 = vmul.f32 %v2301, 1.442695
      %v2529 = vpow.pop %v2528
      %v2530 = vmul.f32 %v2302, 1.442695
      %v2531 = vpow.pop %v2530
      %v2532 = vmul.f32 %v2303, 1.442695
      %v2533 = vpow.pop %v2532
      %v2534 = vmul.f32 %v2304, 1.442695
      %v2535 = vpow.pop %v2534
      %v2536 = vmul.f32 %v2305, 1.442695
      %v2537 = vpow.pop %v2536
      %v2538 = vmul.f32 %v2306, 1.442695
      %v2539 = vpow.pop %v2538
      %v2540 = vmul.f32 %v2307, 1.442695
      %v2541 = vpow.pop %v2540
      %v2542 = vmul.f32 %v2308, 1.442695
      %v2543 = vpow.pop %v2542
      %v2544 = vmul.f32 %v2309, 1.442695
      %v2545 = vpow.pop %v2544
      %v2546 = vmul.f32 %v2310, 1.442695
      %v2547 = vpow.pop %v2546
      %v2548 = vmul.f32 %v2311, 1.442695
      %v2549 = vpow.pop %v2548
      %v2550 = vmul.f32 %v2312, 1.442695
      %v2551 = vpow.pop %v2550
      %v2552 = vmul.f32 %v2313, 1.442695
      %v2553 = vpow.pop %v2552
      %v2554 = vmul.f32 %v2314, 1.442695
      %v2555 = vpow.pop %v2554
      %v2556 = vmul.f32 %v2315, 1.442695
      %v2557 = vpow.pop %v2556
      %v2558 = vmul.f32 %v2316, 1.442695
      %v2559 = vpow.pop %v2558
      %v2560 = vmul.f32 %v2317, 1.442695
      %v2561 = vpow.pop %v2560
      %v2562 = vmul.f32 %v2318, 1.442695
      %v2563 = vpow.pop %v2562
      %v2564 = vmul.f32 %v2319, 1.442695
      %v2565 = vpow.pop %v2564
      %v2566 = vmul.f32 %v2320, 1.442695
      %v2567 = vpow.pop %v2566
      %v2568 = vmul.f32 %v2321, 1.442695
      %v2569 = vpow.pop %v2568
      %v2570 = vmul.f32 %v2322, 1.442695
      %v2571 = vpow.pop %v2570
      %v2572 = vmul.f32 %v2323, 1.442695
      %v2573 = vpow.pop %v2572
      %v2574 = vmul.f32 %v2324, 1.442695
      %v2575 = vpow.pop %v2574
      %v2576 = vmul.f32 %v2325, 1.442695
      %v2577 = vpow.pop %v2576
      %v2578 = vmul.f32 %v2326, 1.442695
      %v2579 = vpow.pop %v2578
      %v2580 = vmul.f32 %v2327, 1.442695
      %v2581 = vpow.pop %v2580
      %v2582 = vmul.f32 %v2328, 1.442695
      %v2583 = vpow.pop %v2582
      %v2584 = vmul.f32 %v2329, 1.442695
      %v2585 = vpow.pop %v2584
      %v2586 = vadd.f32 %v2331, 1.0
      %v2587 = vadd.f32 %v2333, 1.0
      %v2588 = vadd.f32 %v2335, 1.0
      %v2589 = vadd.f32 %v2337, 1.0
      %v2590 = vadd.f32 %v2339, 1.0
      %v2591 = vadd.f32 %v2341, 1.0
      %v2592 = vadd.f32 %v2343, 1.0
      %v2593 = vadd.f32 %v2345, 1.0
      %v2594 = vadd.f32 %v2347, 1.0
      %v2595 = vadd.f32 %v2349, 1.0
      %v2596 = vadd.f32 %v2351, 1.0
      %v2597 = vadd.f32 %v2353, 1.0
      %v2598 = vadd.f32 %v2355, 1.0
      %v2599 = vadd.f32 %v2357, 1.0
      %v2600 = vadd.f32 %v2359, 1.0
      %v2601 = vadd.f32 %v2361, 1.0
      %v2602 = vadd.f32 %v2363, 1.0
      %v2603 = vadd.f32 %v2365, 1.0
      %v2604 = vadd.f32 %v2367, 1.0
      %v2605 = vadd.f32 %v2369, 1.0
      %v2606 = vadd.f32 %v2371, 1.0
      %v2607 = vadd.f32 %v2373, 1.0
      %v2608 = vadd.f32 %v2375, 1.0
      %v2609 = vadd.f32 %v2377, 1.0
      %v2610 = vadd.f32 %v2379, 1.0
      %v2611 = vadd.f32 %v2381, 1.0
      %v2612 = vadd.f32 %v2383, 1.0
      %v2613 = vadd.f32 %v2385, 1.0
      %v2614 = vadd.f32 %v2387, 1.0
      %v2615 = vadd.f32 %v2389, 1.0
      %v2616 = vadd.f32 %v2391, 1.0
      %v2617 = vadd.f32 %v2393, 1.0
      %v2618 = vadd.f32 %v2395, 1.0
      %v2619 = vadd.f32 %v2397, 1.0
      %v2620 = vadd.f32 %v2399, 1.0
      %v2621 = vadd.f32 %v2401, 1.0
      %v2622 = vadd.f32 %v2403, 1.0
      %v2623 = vadd.f32 %v2405, 1.0
      %v2624 = vadd.f32 %v2407, 1.0
      %v2625 = vadd.f32 %v2409, 1.0
      %v2626 = vadd.f32 %v2411, 1.0
      %v2627 = vadd.f32 %v2413, 1.0
      %v2628 = vadd.f32 %v2415, 1.0
      %v2629 = vadd.f32 %v2417, 1.0
      %v2630 = vadd.f32 %v2419, 1.0
      %v2631 = vadd.f32 %v2421, 1.0
      %v2632 = vadd.f32 %v2423, 1.0
      %v2633 = vadd.f32 %v2425, 1.0
      %v2634 = vadd.f32 %v2427, 1.0
      %v2635 = vadd.f32 %v2429, 1.0
      %v2636 = vadd.f32 %v2431, 1.0
      %v2637 = vadd.f32 %v2433, 1.0
      %v2638 = vadd.f32 %v2435, 1.0
      %v2639 = vadd.f32 %v2437, 1.0
      %v2640 = vadd.f32 %v2439, 1.0
      %v2641 = vadd.f32 %v2441, 1.0
      %v2642 = vadd.f32 %v2443, 1.0
      %v2643 = vadd.f32 %v2445, 1.0
      %v2644 = vadd.f32 %v2447, 1.0
      %v2645 = vadd.f32 %v2449, 1.0
      %v2646 = vadd.f32 %v2451, 1.0
      %v2647 = vadd.f32 %v2453, 1.0
      %v2648 = vadd.f32 %v2455, 1.0
      %v2649 = vadd.f32 %v2457, 1.0
      %v2650 = vadd.f32 %v2459, 1.0
      %v2651 = vadd.f32 %v2461, 1.0
      %v2652 = vadd.f32 %v2463, 1.0
      %v2653 = vadd.f32 %v2465, 1.0
      %v2654 = vadd.f32 %v2467, 1.0
      %v2655 = vadd.f32 %v2469, 1.0
      %v2656 = vadd.f32 %v2471, 1.0
      %v2657 = vadd.f32 %v2473, 1.0
      %v2658 = vadd.f32 %v2475, 1.0
      %v2659 = vadd.f32 %v2477, 1.0
      %v2660 = vadd.f32 %v2479, 1.0
      %v2661 = vadd.f32 %v2481, 1.0
      %v2662 = vadd.f32 %v2483, 1.0
      %v2663 = vadd.f32 %v2485, 1.0
      %v2664 = vadd.f32 %v2487, 1.0
      %v2665 = vadd.f32 %v2489, 1.0
      %v2666 = vadd.f32 %v2491, 1.0
      %v2667 = vadd.f32 %v2493, 1.0
      %v2668 = vadd.f32 %v2495, 1.0
      %v2669 = vadd.f32 %v2497, 1.0
      %v2670 = vadd.f32 %v2499, 1.0
      %v2671 = vadd.f32 %v2501, 1.0
      %v2672 = vadd.f32 %v2503, 1.0
      %v2673 = vadd.f32 %v2505, 1.0
      %v2674 = vadd.f32 %v2507, 1.0
      %v2675 = vadd.f32 %v2509, 1.0
      %v2676 = vadd.f32 %v2511, 1.0
      %v2677 = vadd.f32 %v2513, 1.0
      %v2678 = vadd.f32 %v2515, 1.0
      %v2679 = vadd.f32 %v2517, 1.0
      %v2680 = vadd.f32 %v2519, 1.0
      %v2681 = vadd.f32 %v2521, 1.0
      %v2682 = vadd.f32 %v2523, 1.0
      %v2683 = vadd.f32 %v2525, 1.0
      %v2684 = vadd.f32 %v2527, 1.0
      %v2685 = vadd.f32 %v2529, 1.0
      %v2686 = vadd.f32 %v2531, 1.0
      %v2687 = vadd.f32 %v2533, 1.0
      %v2688 = vadd.f32 %v2535, 1.0
      %v2689 = vadd.f32 %v2537, 1.0
      %v2690 = vadd.f32 %v2539, 1.0
      %v2691 = vadd.f32 %v2541, 1.0
      %v2692 = vadd.f32 %v2543, 1.0
      %v2693 = vadd.f32 %v2545, 1.0
      %v2694 = vadd.f32 %v2547, 1.0
      %v2695 = vadd.f32 %v2549, 1.0
      %v2696 = vadd.f32 %v2551, 1.0
      %v2697 = vadd.f32 %v2553, 1.0
      %v2698 = vadd.f32 %v2555, 1.0
      %v2699 = vadd.f32 %v2557, 1.0
      %v2700 = vadd.f32 %v2559, 1.0
      %v2701 = vadd.f32 %v2561, 1.0
      %v2702 = vadd.f32 %v2563, 1.0
      %v2703 = vadd.f32 %v2565, 1.0
      %v2704 = vadd.f32 %v2567, 1.0
      %v2705 = vadd.f32 %v2569, 1.0
      %v2706 = vadd.f32 %v2571, 1.0
      %v2707 = vadd.f32 %v2573, 1.0
      %v2708 = vadd.f32 %v2575, 1.0
      %v2709 = vadd.f32 %v2577, 1.0
      %v2710 = vadd.f32 %v2579, 1.0
      %v2711 = vadd.f32 %v2581, 1.0
      %v2712 = vadd.f32 %v2583, 1.0
      %v2713 = vadd.f32 %v2585, 1.0
      %v2714 = vrcp.pop %v2586
      %v2715 = vmul.f32 1.0, %v2714
      %v2716 = vrcp.pop %v2587
      %v2717 = vmul.f32 1.0, %v2716
      %v2718 = vrcp.pop %v2588
      %v2719 = vmul.f32 1.0, %v2718
      %v2720 = vrcp.pop %v2589
      %v2721 = vmul.f32 1.0, %v2720
      %v2722 = vrcp.pop %v2590
      %v2723 = vmul.f32 1.0, %v2722
      %v2724 = vrcp.pop %v2591
      %v2725 = vmul.f32 1.0, %v2724
      %v2726 = vrcp.pop %v2592
      %v2727 = vmul.f32 1.0, %v2726
      %v2728 = vrcp.pop %v2593
      %v2729 = vmul.f32 1.0, %v2728
      %v2730 = vrcp.pop %v2594
      %v2731 = vmul.f32 1.0, %v2730
      %v2732 = vrcp.pop %v2595
      %v2733 = vmul.f32 1.0, %v2732
      %v2734 = vrcp.pop %v2596
      %v2735 = vmul.f32 1.0, %v2734
      %v2736 = vrcp.pop %v2597
      %v2737 = vmul.f32 1.0, %v2736
      %v2738 = vrcp.pop %v2598
      %v2739 = vmul.f32 1.0, %v2738
      %v2740 = vrcp.pop %v2599
      %v2741 = vmul.f32 1.0, %v2740
      %v2742 = vrcp.pop %v2600
      %v2743 = vmul.f32 1.0, %v2742
      %v2744 = vrcp.pop %v2601
      %v2745 = vmul.f32 1.0, %v2744
      %v2746 = vrcp.pop %v2602
      %v2747 = vmul.f32 1.0, %v2746
      %v2748 = vrcp.pop %v2603
      %v2749 = vmul.f32 1.0, %v2748
      %v2750 = vrcp.pop %v2604
      %v2751 = vmul.f32 1.0, %v2750
      %v2752 = vrcp.pop %v2605
      %v2753 = vmul.f32 1.0, %v2752
      %v2754 = vrcp.pop %v2606
      %v2755 = vmul.f32 1.0, %v2754
      %v2756 = vrcp.pop %v2607
      %v2757 = vmul.f32 1.0, %v2756
      %v2758 = vrcp.pop %v2608
      %v2759 = vmul.f32 1.0, %v2758
      %v2760 = vrcp.pop %v2609
      %v2761 = vmul.f32 1.0, %v2760
      %v2762 = vrcp.pop %v2610
      %v2763 = vmul.f32 1.0, %v2762
      %v2764 = vrcp.pop %v2611
      %v2765 = vmul.f32 1.0, %v2764
      %v2766 = vrcp.pop %v2612
      %v2767 = vmul.f32 1.0, %v2766
      %v2768 = vrcp.pop %v2613
      %v2769 = vmul.f32 1.0, %v2768
      %v2770 = vrcp.pop %v2614
      %v2771 = vmul.f32 1.0, %v2770
      %v2772 = vrcp.pop %v2615
      %v2773 = vmul.f32 1.0, %v2772
      %v2774 = vrcp.pop %v2616
      %v2775 = vmul.f32 1.0, %v2774
      %v2776 = vrcp.pop %v2617
      %v2777 = vmul.f32 1.0, %v2776
      %v2778 = vrcp.pop %v2618
      %v2779 = vmul.f32 1.0, %v2778
      %v2780 = vrcp.pop %v2619
      %v2781 = vmul.f32 1.0, %v2780
      %v2782 = vrcp.pop %v2620
      %v2783 = vmul.f32 1.0, %v2782
      %v2784 = vrcp.pop %v2621
      %v2785 = vmul.f32 1.0, %v2784
      %v2786 = vrcp.pop %v2622
      %v2787 = vmul.f32 1.0, %v2786
      %v2788 = vrcp.pop %v2623
      %v2789 = vmul.f32 1.0, %v2788
      %v2790 = vrcp.pop %v2624
      %v2791 = vmul.f32 1.0, %v2790
      %v2792 = vrcp.pop %v2625
      %v2793 = vmul.f32 1.0, %v2792
      %v2794 = vrcp.pop %v2626
      %v2795 = vmul.f32 1.0, %v2794
      %v2796 = vrcp.pop %v2627
      %v2797 = vmul.f32 1.0, %v2796
      %v2798 = vrcp.pop %v2628
      %v2799 = vmul.f32 1.0, %v2798
      %v2800 = vrcp.pop %v2629
      %v2801 = vmul.f32 1.0, %v2800
      %v2802 = vrcp.pop %v2630
      %v2803 = vmul.f32 1.0, %v2802
      %v2804 = vrcp.pop %v2631
      %v2805 = vmul.f32 1.0, %v2804
      %v2806 = vrcp.pop %v2632
      %v2807 = vmul.f32 1.0, %v2806
      %v2808 = vrcp.pop %v2633
      %v2809 = vmul.f32 1.0, %v2808
      %v2810 = vrcp.pop %v2634
      %v2811 = vmul.f32 1.0, %v2810
      %v2812 = vrcp.pop %v2635
      %v2813 = vmul.f32 1.0, %v2812
      %v2814 = vrcp.pop %v2636
      %v2815 = vmul.f32 1.0, %v2814
      %v2816 = vrcp.pop %v2637
      %v2817 = vmul.f32 1.0, %v2816
      %v2818 = vrcp.pop %v2638
      %v2819 = vmul.f32 1.0, %v2818
      %v2820 = vrcp.pop %v2639
      %v2821 = vmul.f32 1.0, %v2820
      %v2822 = vrcp.pop %v2640
      %v2823 = vmul.f32 1.0, %v2822
      %v2824 = vrcp.pop %v2641
      %v2825 = vmul.f32 1.0, %v2824
      %v2826 = vrcp.pop %v2642
      %v2827 = vmul.f32 1.0, %v2826
      %v2828 = vrcp.pop %v2643
      %v2829 = vmul.f32 1.0, %v2828
      %v2830 = vrcp.pop %v2644
      %v2831 = vmul.f32 1.0, %v2830
      %v2832 = vrcp.pop %v2645
      %v2833 = vmul.f32 1.0, %v2832
      %v2834 = vrcp.pop %v2646
      %v2835 = vmul.f32 1.0, %v2834
      %v2836 = vrcp.pop %v2647
      %v2837 = vmul.f32 1.0, %v2836
      %v2838 = vrcp.pop %v2648
      %v2839 = vmul.f32 1.0, %v2838
      %v2840 = vrcp.pop %v2649
      %v2841 = vmul.f32 1.0, %v2840
      %v2842 = vrcp.pop %v2650
      %v2843 = vmul.f32 1.0, %v2842
      %v2844 = vrcp.pop %v2651
      %v2845 = vmul.f32 1.0, %v2844
      %v2846 = vrcp.pop %v2652
      %v2847 = vmul.f32 1.0, %v2846
      %v2848 = vrcp.pop %v2653
      %v2849 = vmul.f32 1.0, %v2848
      %v2850 = vrcp.pop %v2654
      %v2851 = vmul.f32 1.0, %v2850
      %v2852 = vrcp.pop %v2655
      %v2853 = vmul.f32 1.0, %v2852
      %v2854 = vrcp.pop %v2656
      %v2855 = vmul.f32 1.0, %v2854
      %v2856 = vrcp.pop %v2657
      %v2857 = vmul.f32 1.0, %v2856
      %v2858 = vrcp.pop %v2658
      %v2859 = vmul.f32 1.0, %v2858
      %v2860 = vrcp.pop %v2659
      %v2861 = vmul.f32 1.0, %v2860
      %v2862 = vrcp.pop %v2660
      %v2863 = vmul.f32 1.0, %v2862
      %v2864 = vrcp.pop %v2661
      %v2865 = vmul.f32 1.0, %v2864
      %v2866 = vrcp.pop %v2662
      %v2867 = vmul.f32 1.0, %v2866
      %v2868 = vrcp.pop %v2663
      %v2869 = vmul.f32 1.0, %v2868
      %v2870 = vrcp.pop %v2664
      %v2871 = vmul.f32 1.0, %v2870
      %v2872 = vrcp.pop %v2665
      %v2873 = vmul.f32 1.0, %v2872
      %v2874 = vrcp.pop %v2666
      %v2875 = vmul.f32 1.0, %v2874
      %v2876 = vrcp.pop %v2667
      %v2877 = vmul.f32 1.0, %v2876
      %v2878 = vrcp.pop %v2668
      %v2879 = vmul.f32 1.0, %v2878
      %v2880 = vrcp.pop %v2669
      %v2881 = vmul.f32 1.0, %v2880
      %v2882 = vrcp.pop %v2670
      %v2883 = vmul.f32 1.0, %v2882
      %v2884 = vrcp.pop %v2671
      %v2885 = vmul.f32 1.0, %v2884
      %v2886 = vrcp.pop %v2672
      %v2887 = vmul.f32 1.0, %v2886
      %v2888 = vrcp.pop %v2673
      %v2889 = vmul.f32 1.0, %v2888
      %v2890 = vrcp.pop %v2674
      %v2891 = vmul.f32 1.0, %v2890
      %v2892 = vrcp.pop %v2675
      %v2893 = vmul.f32 1.0, %v2892
      %v2894 = vrcp.pop %v2676
      %v2895 = vmul.f32 1.0, %v2894
      %v2896 = vrcp.pop %v2677
      %v2897 = vmul.f32 1.0, %v2896
      %v2898 = vrcp.pop %v2678
      %v2899 = vmul.f32 1.0, %v2898
      %v2900 = vrcp.pop %v2679
      %v2901 = vmul.f32 1.0, %v2900
      %v2902 = vrcp.pop %v2680
      %v2903 = vmul.f32 1.0, %v2902
      %v2904 = vrcp.pop %v2681
      %v2905 = vmul.f32 1.0, %v2904
      %v2906 = vrcp.pop %v2682
      %v2907 = vmul.f32 1.0, %v2906
      %v2908 = vrcp.pop %v2683
      %v2909 = vmul.f32 1.0, %v2908
      %v2910 = vrcp.pop %v2684
      %v2911 = vmul.f32 1.0, %v2910
      %v2912 = vrcp.pop %v2685
      %v2913 = vmul.f32 1.0, %v2912
      %v2914 = vrcp.pop %v2686
      %v2915 = vmul.f32 1.0, %v2914
      %v2916 = vrcp.pop %v2687
      %v2917 = vmul.f32 1.0, %v2916
      %v2918 = vrcp.pop %v2688
      %v2919 = vmul.f32 1.0, %v2918
      %v2920 = vrcp.pop %v2689
      %v2921 = vmul.f32 1.0, %v2920
      %v2922 = vrcp.pop %v2690
      %v2923 = vmul.f32 1.0, %v2922
      %v2924 = vrcp.pop %v2691
      %v2925 = vmul.f32 1.0, %v2924
      %v2926 = vrcp.pop %v2692
      %v2927 = vmul.f32 1.0, %v2926
      %v2928 = vrcp.pop %v2693
      %v2929 = vmul.f32 1.0, %v2928
      %v2930 = vrcp.pop %v2694
      %v2931 = vmul.f32 1.0, %v2930
      %v2932 = vrcp.pop %v2695
      %v2933 = vmul.f32 1.0, %v2932
      %v2934 = vrcp.pop %v2696
      %v2935 = vmul.f32 1.0, %v2934
      %v2936 = vrcp.pop %v2697
      %v2937 = vmul.f32 1.0, %v2936
      %v2938 = vrcp.pop %v2698
      %v2939 = vmul.f32 1.0, %v2938
      %v2940 = vrcp.pop %v2699
      %v2941 = vmul.f32 1.0, %v2940
      %v2942 = vrcp.pop %v2700
      %v2943 = vmul.f32 1.0, %v2942
      %v2944 = vrcp.pop %v2701
      %v2945 = vmul.f32 1.0, %v2944
      %v2946 = vrcp.pop %v2702
      %v2947 = vmul.f32 1.0, %v2946
      %v2948 = vrcp.pop %v2703
      %v2949 = vmul.f32 1.0, %v2948
      %v2950 = vrcp.pop %v2704
      %v2951 = vmul.f32 1.0, %v2950
      %v2952 = vrcp.pop %v2705
      %v2953 = vmul.f32 1.0, %v2952
      %v2954 = vrcp.pop %v2706
      %v2955 = vmul.f32 1.0, %v2954
      %v2956 = vrcp.pop %v2707
      %v2957 = vmul.f32 1.0, %v2956
      %v2958 = vrcp.pop %v2708
      %v2959 = vmul.f32 1.0, %v2958
      %v2960 = vrcp.pop %v2709
      %v2961 = vmul.f32 1.0, %v2960
      %v2962 = vrcp.pop %v2710
      %v2963 = vmul.f32 1.0, %v2962
      %v2964 = vrcp.pop %v2711
      %v2965 = vmul.f32 1.0, %v2964
      %v2966 = vrcp.pop %v2712
      %v2967 = vmul.f32 1.0, %v2966
      %v2968 = vrcp.pop %v2713
      %v2969 = vmul.f32 1.0, %v2968
      %vm2970 = vcmask 31744
      %2971 = vst.msk [vmem:[%s172] sm:$0xff] %vm2970, %v2715
      %2972 = vst.msk [vmem:[%s172 + $0x8] sm:$0xff] %vm2970, %v2717
      %2973 = vst.msk [vmem:[%s172 + $0x10] sm:$0xff] %vm2970, %v2719
      %2974 = vst.msk [vmem:[%s172 + $0x18] sm:$0xff] %vm2970, %v2721
      %2975 = vst.msk [vmem:[%s172 + $0x20] sm:$0xff] %vm2970, %v2723
      %2976 = vst.msk [vmem:[%s172 + $0x28] sm:$0xff] %vm2970, %v2725
      %2977 = vst.msk [vmem:[%s172 + $0x30] sm:$0xff] %vm2970, %v2727
      %2978 = vst.msk [vmem:[%s172 + $0x38] sm:$0xff] %vm2970, %v2729
      %2979 = vst.msk [vmem:[%s172 + $0x40] sm:$0xff] %vm2970, %v2731
      %2980 = vst.msk [vmem:[%s172 + $0x48] sm:$0xff] %vm2970, %v2733
      %2981 = vst.msk [vmem:[%s172 + $0x50] sm:$0xff] %vm2970, %v2735
      %2982 = vst.msk [vmem:[%s172 + $0x58] sm:$0xff] %vm2970, %v2737
      %2983 = vst.msk [vmem:[%s172 + $0x60] sm:$0xff] %vm2970, %v2739
      %2984 = vst.msk [vmem:[%s172 + $0x68] sm:$0xff] %vm2970, %v2741
      %2985 = vst.msk [vmem:[%s172 + $0x70] sm:$0xff] %vm2970, %v2743
      %2986 = vst.msk [vmem:[%s172 + $0x78] sm:$0xff] %vm2970, %v2745
      %2987 = vst.msk [vmem:[%s172 + $0x80] sm:$0xff] %vm2970, %v2747
      %2988 = vst.msk [vmem:[%s172 + $0x88] sm:$0xff] %vm2970, %v2749
      %2989 = vst.msk [vmem:[%s172 + $0x90] sm:$0xff] %vm2970, %v2751
      %2990 = vst.msk [vmem:[%s172 + $0x98] sm:$0xff] %vm2970, %v2753
      %2991 = vst.msk [vmem:[%s172 + $0xa0] sm:$0xff] %vm2970, %v2755
      %2992 = vst.msk [vmem:[%s172 + $0xa8] sm:$0xff] %vm2970, %v2757
      %2993 = vst.msk [vmem:[%s172 + $0xb0] sm:$0xff] %vm2970, %v2759
      %2994 = vst.msk [vmem:[%s172 + $0xb8] sm:$0xff] %vm2970, %v2761
      %2995 = vst.msk [vmem:[%s172 + $0xc0] sm:$0xff] %vm2970, %v2763
      %2996 = vst.msk [vmem:[%s172 + $0xc8] sm:$0xff] %vm2970, %v2765
      %2997 = vst.msk [vmem:[%s172 + $0xd0] sm:$0xff] %vm2970, %v2767
      %2998 = vst.msk [vmem:[%s172 + $0xd8] sm:$0xff] %vm2970, %v2769
      %2999 = vst.msk [vmem:[%s172 + $0xe0] sm:$0xff] %vm2970, %v2771
      %3000 = vst.msk [vmem:[%s172 + $0xe8] sm:$0xff] %vm2970, %v2773
      %3001 = vst.msk [vmem:[%s172 + $0xf0] sm:$0xff] %vm2970, %v2775
      %3002 = vst.msk [vmem:[%s172 + $0xf8] sm:$0xff] %vm2970, %v2777
      %3003 = vst.msk [vmem:[%s172 + $0x100] sm:$0xff] %vm2970, %v2779
      %3004 = vst.msk [vmem:[%s172 + $0x108] sm:$0xff] %vm2970, %v2781
      %3005 = vst.msk [vmem:[%s172 + $0x110] sm:$0xff] %vm2970, %v2783
      %3006 = vst.msk [vmem:[%s172 + $0x118] sm:$0xff] %vm2970, %v2785
      %3007 = vst.msk [vmem:[%s172 + $0x120] sm:$0xff] %vm2970, %v2787
      %3008 = vst.msk [vmem:[%s172 + $0x128] sm:$0xff] %vm2970, %v2789
      %3009 = vst.msk [vmem:[%s172 + $0x130] sm:$0xff] %vm2970, %v2791
      %3010 = vst.msk [vmem:[%s172 + $0x138] sm:$0xff] %vm2970, %v2793
      %3011 = vst.msk [vmem:[%s172 + $0x140] sm:$0xff] %vm2970, %v2795
      %3012 = vst.msk [vmem:[%s172 + $0x148] sm:$0xff] %vm2970, %v2797
      %3013 = vst.msk [vmem:[%s172 + $0x150] sm:$0xff] %vm2970, %v2799
      %3014 = vst.msk [vmem:[%s172 + $0x158] sm:$0xff] %vm2970, %v2801
      %3015 = vst.msk [vmem:[%s172 + $0x160] sm:$0xff] %vm2970, %v2803
      %3016 = vst.msk [vmem:[%s172 + $0x168] sm:$0xff] %vm2970, %v2805
      %3017 = vst.msk [vmem:[%s172 + $0x170] sm:$0xff] %vm2970, %v2807
      %3018 = vst.msk [vmem:[%s172 + $0x178] sm:$0xff] %vm2970, %v2809
      %3019 = vst.msk [vmem:[%s172 + $0x180] sm:$0xff] %vm2970, %v2811
      %3020 = vst.msk [vmem:[%s172 + $0x188] sm:$0xff] %vm2970, %v2813
      %3021 = vst.msk [vmem:[%s172 + $0x190] sm:$0xff] %vm2970, %v2815
      %3022 = vst.msk [vmem:[%s172 + $0x198] sm:$0xff] %vm2970, %v2817
      %3023 = vst.msk [vmem:[%s172 + $0x1a0] sm:$0xff] %vm2970, %v2819
      %3024 = vst.msk [vmem:[%s172 + $0x1a8] sm:$0xff] %vm2970, %v2821
      %3025 = vst.msk [vmem:[%s172 + $0x1b0] sm:$0xff] %vm2970, %v2823
      %3026 = vst.msk [vmem:[%s172 + $0x1b8] sm:$0xff] %vm2970, %v2825
      %3027 = vst.msk [vmem:[%s172 + $0x1c0] sm:$0xff] %vm2970, %v2827
      %3028 = vst.msk [vmem:[%s172 + $0x1c8] sm:$0xff] %vm2970, %v2829
      %3029 = vst.msk [vmem:[%s172 + $0x1d0] sm:$0xff] %vm2970, %v2831
      %3030 = vst.msk [vmem:[%s172 + $0x1d8] sm:$0xff] %vm2970, %v2833
      %3031 = vst.msk [vmem:[%s172 + $0x1e0] sm:$0xff] %vm2970, %v2835
      %3032 = vst.msk [vmem:[%s172 + $0x1e8] sm:$0xff] %vm2970, %v2837
      %3033 = vst.msk [vmem:[%s172 + $0x1f0] sm:$0xff] %vm2970, %v2839
      %3034 = vst.msk [vmem:[%s172 + $0x1f8] sm:$0xff] %vm2970, %v2841
      %3035 = vst.msk [vmem:[%s172 + $0x200] sm:$0xff] %vm2970, %v2843
      %3036 = vst.msk [vmem:[%s172 + $0x208] sm:$0xff] %vm2970, %v2845
      %3037 = vst.msk [vmem:[%s172 + $0x210] sm:$0xff] %vm2970, %v2847
      %3038 = vst.msk [vmem:[%s172 + $0x218] sm:$0xff] %vm2970, %v2849
      %3039 = vst.msk [vmem:[%s172 + $0x220] sm:$0xff] %vm2970, %v2851
      %3040 = vst.msk [vmem:[%s172 + $0x228] sm:$0xff] %vm2970, %v2853
      %3041 = vst.msk [vmem:[%s172 + $0x230] sm:$0xff] %vm2970, %v2855
      %3042 = vst.msk [vmem:[%s172 + $0x238] sm:$0xff] %vm2970, %v2857
      %3043 = vst.msk [vmem:[%s172 + $0x240] sm:$0xff] %vm2970, %v2859
      %3044 = vst.msk [vmem:[%s172 + $0x248] sm:$0xff] %vm2970, %v2861
      %3045 = vst.msk [vmem:[%s172 + $0x250] sm:$0xff] %vm2970, %v2863
      %3046 = vst.msk [vmem:[%s172 + $0x258] sm:$0xff] %vm2970, %v2865
      %3047 = vst.msk [vmem:[%s172 + $0x260] sm:$0xff] %vm2970, %v2867
      %3048 = vst.msk [vmem:[%s172 + $0x268] sm:$0xff] %vm2970, %v2869
      %3049 = vst.msk [vmem:[%s172 + $0x270] sm:$0xff] %vm2970, %v2871
      %3050 = vst.msk [vmem:[%s172 + $0x278] sm:$0xff] %vm2970, %v2873
      %3051 = vst.msk [vmem:[%s172 + $0x280] sm:$0xff] %vm2970, %v2875
      %3052 = vst.msk [vmem:[%s172 + $0x288] sm:$0xff] %vm2970, %v2877
      %3053 = vst.msk [vmem:[%s172 + $0x290] sm:$0xff] %vm2970, %v2879
      %3054 = vst.msk [vmem:[%s172 + $0x298] sm:$0xff] %vm2970, %v2881
      %3055 = vst.msk [vmem:[%s172 + $0x2a0] sm:$0xff] %vm2970, %v2883
      %3056 = vst.msk [vmem:[%s172 + $0x2a8] sm:$0xff] %vm2970, %v2885
      %3057 = vst.msk [vmem:[%s172 + $0x2b0] sm:$0xff] %vm2970, %v2887
      %3058 = vst.msk [vmem:[%s172 + $0x2b8] sm:$0xff] %vm2970, %v2889
      %3059 = vst.msk [vmem:[%s172 + $0x2c0] sm:$0xff] %vm2970, %v2891
      %3060 = vst.msk [vmem:[%s172 + $0x2c8] sm:$0xff] %vm2970, %v2893
      %3061 = vst.msk [vmem:[%s172 + $0x2d0] sm:$0xff] %vm2970, %v2895
      %3062 = vst.msk [vmem:[%s172 + $0x2d8] sm:$0xff] %vm2970, %v2897
      %3063 = vst.msk [vmem:[%s172 + $0x2e0] sm:$0xff] %vm2970, %v2899
      %3064 = vst.msk [vmem:[%s172 + $0x2e8] sm:$0xff] %vm2970, %v2901
      %3065 = vst.msk [vmem:[%s172 + $0x2f0] sm:$0xff] %vm2970, %v2903
      %3066 = vst.msk [vmem:[%s172 + $0x2f8] sm:$0xff] %vm2970, %v2905
      %3067 = vst.msk [vmem:[%s172 + $0x300] sm:$0xff] %vm2970, %v2907
      %3068 = vst.msk [vmem:[%s172 + $0x308] sm:$0xff] %vm2970, %v2909
      %3069 = vst.msk [vmem:[%s172 + $0x310] sm:$0xff] %vm2970, %v2911
      %3070 = vst.msk [vmem:[%s172 + $0x318] sm:$0xff] %vm2970, %v2913
      %3071 = vst.msk [vmem:[%s172 + $0x320] sm:$0xff] %vm2970, %v2915
      %3072 = vst.msk [vmem:[%s172 + $0x328] sm:$0xff] %vm2970, %v2917
      %3073 = vst.msk [vmem:[%s172 + $0x330] sm:$0xff] %vm2970, %v2919
      %3074 = vst.msk [vmem:[%s172 + $0x338] sm:$0xff] %vm2970, %v2921
      %3075 = vst.msk [vmem:[%s172 + $0x340] sm:$0xff] %vm2970, %v2923
      %3076 = vst.msk [vmem:[%s172 + $0x348] sm:$0xff] %vm2970, %v2925
      %3077 = vst.msk [vmem:[%s172 + $0x350] sm:$0xff] %vm2970, %v2927
      %3078 = vst.msk [vmem:[%s172 + $0x358] sm:$0xff] %vm2970, %v2929
      %3079 = vst.msk [vmem:[%s172 + $0x360] sm:$0xff] %vm2970, %v2931
      %3080 = vst.msk [vmem:[%s172 + $0x368] sm:$0xff] %vm2970, %v2933
      %3081 = vst.msk [vmem:[%s172 + $0x370] sm:$0xff] %vm2970, %v2935
      %3082 = vst.msk [vmem:[%s172 + $0x378] sm:$0xff] %vm2970, %v2937
      %3083 = vst.msk [vmem:[%s172 + $0x380] sm:$0xff] %vm2970, %v2939
      %3084 = vst.msk [vmem:[%s172 + $0x388] sm:$0xff] %vm2970, %v2941
      %3085 = vst.msk [vmem:[%s172 + $0x390] sm:$0xff] %vm2970, %v2943
      %3086 = vst.msk [vmem:[%s172 + $0x398] sm:$0xff] %vm2970, %v2945
      %3087 = vst.msk [vmem:[%s172 + $0x3a0] sm:$0xff] %vm2970, %v2947
      %3088 = vst.msk [vmem:[%s172 + $0x3a8] sm:$0xff] %vm2970, %v2949
      %3089 = vst.msk [vmem:[%s172 + $0x3b0] sm:$0xff] %vm2970, %v2951
      %3090 = vst.msk [vmem:[%s172 + $0x3b8] sm:$0xff] %vm2970, %v2953
      %3091 = vst.msk [vmem:[%s172 + $0x3c0] sm:$0xff] %vm2970, %v2955
      %3092 = vst.msk [vmem:[%s172 + $0x3c8] sm:$0xff] %vm2970, %v2957
      %3093 = vst.msk [vmem:[%s172 + $0x3d0] sm:$0xff] %vm2970, %v2959
      %3094 = vst.msk [vmem:[%s172 + $0x3d8] sm:$0xff] %vm2970, %v2961
      %3095 = vst.msk [vmem:[%s172 + $0x3e0] sm:$0xff] %vm2970, %v2963
      %3096 = vst.msk [vmem:[%s172 + $0x3e8] sm:$0xff] %vm2970, %v2965
      %3097 = vst.msk [vmem:[%s172 + $0x3f0] sm:$0xff] %vm2970, %v2967
      %3098 = vst.msk [vmem:[%s172 + $0x3f8] sm:$0xff] %vm2970, %v2969
      %s3099 = smul.u32 128, %s14
      %p3100 = scmp.lt.s32.totalorder %s3099, 383
      %s3101 = scalar_select %p3100, %s3099, 383
      %s3102 = smul.addr %s3101, 8
      %s3103 = scalar_lea.vmem %s3, %s3102
      // Predicated region
      $region33: #{rgb_network_forward.1} parent=31 // pred_check
        %p3104 = pneg %p100
      $region34: #{rgb_network_forward.1} parent=31 // pred_check_branch
        %3106 = sbr.rel (%p3104) target = $region36
      $region35: #{rgb_network_forward.1} parent=31 // pred_region
        %s3107 = smul.u32 128, %s14
      $region36: #{rgb_network_forward.1} parent=31 // pred_fallthru
        _
    $region32: #{rgb_network_forward.1} parent=5 // pred_fallthru
      _
    %p3108 = scmp.le.s32.totalorder 2, %s9
    // Predicated region
    $region37: #{rgb_network_forward.1} parent=5 // pred_check
      %p3109 = pneg %p3108
    $region38: #{rgb_network_forward.1} parent=5 // pred_check_branch
      %3111 = sbr.rel (%p3109) target = $region40
    $region39: #{rgb_network_forward.1} parent=5 // pred_region
      %s3112 = ssub.s32 %s9, 2
      // Predicated region
      $region41: #{rgb_network_forward.1} parent=39 // pred_check
        %p3113 = pneg %p106
      $region42: #{rgb_network_forward.1} parent=39 // pred_check_branch
        %3115 = sbr.rel (%p3113) target = $region44
      $region43: #{rgb_network_forward.1} parent=39 // pred_region
        %s3116 = smul.u32 128, %s15
        %p3117 = scmp.lt.s32.totalorder %s3116, 383
        %s3118 = scalar_select %p3117, %s3116, 383
        %s3119 = smul.addr %s3118, 8
        %s3120 = scalar_lea.vmem %s3, %s3119
      $region44: #{rgb_network_forward.1} parent=39 // pred_fallthru
        _
    $region40: #{rgb_network_forward.1} parent=5 // pred_fallthru
      _
  $region6: #{rgb_network_forward.1} parent=0 // loop_footer
    %s13 = sadd.s32 1, %s9
  $region7: #{rgb_network_forward.1} parent=0 // loop_footer_branch
    %8 = sbr.rel target = $region3
  $region8: #{rgb_network_forward.1} parent=0 // loop_exit
    _

</llo_original>
